<compile_context>
chip_gen: v5e
topology: v5e:2x2
jax: 0.10.0
libtpu: 0.0.40
codegen_flags: <defaults>
</compile_context>

<pallas_src>
import functools

import jax
import jax.numpy as jnp
from jax.experimental import pallas as pl
from jax.experimental.pallas import tpu as pltpu


# --------------------------------------------------------------------------
# Fused Pallas kernel: 3x3 "same" conv + ReLU + global avg pool + MLP head
# --------------------------------------------------------------------------
def mrinet_fused_kernel(h, w, c_enc,
                        x_ref, wt_ref, bc_ref, pool_ref,
                        w1_ref, b1_ref, w2_ref, b2_ref, w3_ref, b3_ref,
                        out_ref):
    """One grid step == one frame.

    x_ref    : (1, (H+3)*(W+2), C) bf16   zero-padded frame, padded spatial
                                          positions flattened row-major onto
                                          the sublane axis, channels on lanes.
    wt_ref   : (9, C, C_enc)       bf16   conv taps, tap index = dy*3 + dx.
    bc_ref   : (1, C_enc)          f32    conv bias.
    pool_ref : (1, H*(W+2))        f32    masked avg-pool vector: 0 on the two
                                          pad columns, 1/(H*W) elsewhere.
    w*/b*    :                            resident classifier params.
    out_ref  : (1, 1, LANES)       f32    lane-dense padded logits.
    """
    wp2 = w + 2
    p = h * wp2                      # base positions (incl. 2 pad cols / row)

    # --- conv as 9 statically shifted matmuls over the flattened frame -----
    acc = jnp.zeros((p, c_enc), jnp.float32)
    for dy in range(3):
        for dx in range(3):
            off = dy * wp2 + dx
            xs = x_ref[0, off:off + p, :]                      # (p, C) bf16
            acc = acc + jnp.dot(xs, wt_ref[dy * 3 + dx],
                                preferred_element_type=jnp.float32)
    z = jnp.maximum(acc + bc_ref[...], 0.0)                    # f32 epilogue

    # --- global average pool on the MXU (mask + scaling folded into pool) --
    feat = jnp.dot(pool_ref[...], z,
                   preferred_element_type=jnp.float32)         # (1, C_enc)

    # --- fused classifier: (Linear -> ReLU -> Dropout) x 3 -----------------
    # TODO(synk): nn.Dropout is identity at inference; train-mode RNG dropout
    # is not implemented here.
    h1 = jnp.maximum(
        jnp.dot(feat.astype(jnp.bfloat16), w1_ref[...],
                preferred_element_type=jnp.float32) + b1_ref[...], 0.0)
    h2 = jnp.maximum(
        jnp.dot(h1.astype(jnp.bfloat16), w2_ref[...],
                preferred_element_type=jnp.float32) + b2_ref[...], 0.0)
    # Trailing ReLU reproduces the _make_classifier quirk (ReLU + Dropout also
    # follow the final Linear because `size != layers[-1]` for it too).
    logits = jnp.maximum(
        jnp.dot(h2.astype(jnp.bfloat16), w3_ref[...],
                preferred_element_type=jnp.float32) + b3_ref[...], 0.0)
    out_ref[0] = logits


# --------------------------------------------------------------------------
# Wrapper: layout prep (pad/transpose/cast) + pallas_call plumbing
# --------------------------------------------------------------------------
def mrinet_forward(x, params):
    """MRINet.forward: x (B, T, C, H, W) f32 -> logits (B*T, n_classes) f32."""
    b, t, c, h, w = x.shape
    n = b * t
    wp2 = w + 2
    rows = (h + 3) * wp2             # 1 top + 2 bottom pad rows (tap overrun)
    p_base = h * wp2

    # ---- layout prep (cheap XLA ops, ~1x the input bytes, no 9x im2col) ----
    xf = x.reshape(n, c, h, w)                       # x.view(-1, C, H, W)
    xhwc = jnp.transpose(xf, (0, 2, 3, 1))           # NCHW -> NHWC
    xpad = jnp.pad(xhwc, ((0, 0), (1, 2), (1, 1), (0, 0)))
    xcol = xpad.reshape(n, rows, c).astype(jnp.bfloat16)

    c_enc = params["w_conv"].shape[0]
    # (Cenc, C, 3, 3) OIHW -> (9, C, Cenc), tap index = dy*3 + dx
    w_taps = jnp.transpose(params["w_conv"], (2, 3, 1, 0)).reshape(
        9, c, c_enc).astype(jnp.bfloat16)
    bc = params["b_conv"].reshape(1, c_enc).astype(jnp.float32)

    # masked average-pool vector: 0 on the two pad columns, 1/(H*W) elsewhere
    col = jnp.arange(p_base, dtype=jnp.int32) % wp2
    pool_vec = jnp.where(col < w, 1.0 / (h * w), 0.0).astype(
        jnp.float32).reshape(1, p_base)

    n_classes = params["w3"].shape[0]
    lanes = ((n_classes + 127) // 128) * 128         # lane-dense output pad
    w1 = params["w1"].T.astype(jnp.bfloat16)         # (Cenc, L1)
    b1 = params["b1"].reshape(1, -1).astype(jnp.float32)
    w2 = params["w2"].T.astype(jnp.bfloat16)         # (L1, L2)
    b2 = params["b2"].reshape(1, -1).astype(jnp.float32)
    w3 = jnp.zeros((params["w3"].shape[1], lanes), jnp.bfloat16)
    w3 = w3.at[:, :n_classes].set(params["w3"].T.astype(jnp.bfloat16))
    b3 = jnp.zeros((1, lanes), jnp.float32)
    b3 = b3.at[:, :n_classes].set(params["b3"].astype(jnp.float32))

    kernel = functools.partial(mrinet_fused_kernel, h, w, c_enc)
    out = pl.pallas_call(
        kernel,
        out_shape=jax.ShapeDtypeStruct((n, 1, lanes), jnp.float32),
        grid=(n,),
        in_specs=[
            pl.BlockSpec((1, rows, c), lambda i: (i, 0, 0)),    # frame i
            pl.BlockSpec((9, c, c_enc), lambda i: (0, 0, 0)),   # resident
            pl.BlockSpec((1, c_enc), lambda i: (0, 0)),
            pl.BlockSpec((1, p_base), lambda i: (0, 0)),
            pl.BlockSpec(w1.shape, lambda i: (0, 0)),
            pl.BlockSpec(b1.shape, lambda i: (0, 0)),
            pl.BlockSpec(w2.shape, lambda i: (0, 0)),
            pl.BlockSpec(b2.shape, lambda i: (0, 0)),
            pl.BlockSpec(w3.shape, lambda i: (0, 0)),
            pl.BlockSpec(b3.shape, lambda i: (0, 0)),
        ],
        out_specs=pl.BlockSpec((1, 1, lanes), lambda i: (i, 0, 0)),
        compiler_params=pltpu.CompilerParams(
            dimension_semantics=("parallel",),
            vmem_limit_bytes=32 * 1024 * 1024),
    )(xcol, w_taps, bc, pool_vec, w1, b1, w2, b2, w3, b3)

    return out.reshape(n, lanes)[:, :n_classes]


# --------------------------------------------------------------------------
# Pure-JAX reference (matches the kernel's bf16-operand / f32-accumulate math)
# --------------------------------------------------------------------------
def reference_forward(x, params):
    b, t, c, h, w = x.shape
    f32, bf16 = jnp.float32, jnp.bfloat16
    xf = x.reshape(b * t, c, h, w).astype(bf16)
    wc = params["w_conv"].astype(bf16)
    y = jax.lax.conv_general_dilated(
        xf, wc, (1, 1), "SAME",
        dimension_numbers=("NCHW", "OIHW", "NCHW"),
        preferred_element_type=f32)
    y = jnp.maximum(y + params["b_conv"][None, :, None, None], 0.0)
    feat = jnp.mean(y, axis=(2, 3))                            # (N, Cenc) f32

    def lin_relu(v, wgt, bias):
        z = jnp.dot(v.astype(bf16), wgt.T.astype(bf16),
                    preferred_element_type=f32)
        return jnp.maximum(z + bias, 0.0)

    h1 = lin_relu(feat, params["w1"], params["b1"])
    h2 = lin_relu(h1, params["w2"], params["b2"])
    return lin_relu(h2, params["w3"], params["b3"])   # trailing-ReLU quirk


# --------------------------------------------------------------------------
# Deterministic parameter construction (PyTorch-style shapes)
# --------------------------------------------------------------------------
def make_params(c_in, c_enc, layers, n_classes, key):
    ks = jax.random.split(key, 8)
    sizes = [c_enc] + list(layers) + [n_classes]               # [8, 64, 32, 3]

    def lin(k, fan_in, fan_out):
        s = 1.0 / jnp.sqrt(fan_in)
        return jax.random.uniform(k, (fan_out, fan_in), jnp.float32, -s, s)

    return {
        "w_conv": 0.1 * jax.random.normal(ks[0], (c_enc, c_in, 3, 3), jnp.float32),
        "b_conv": 0.01 * jax.random.normal(ks[1], (c_enc,), jnp.float32),
        "w1": lin(ks[2], sizes[0], sizes[1]),
        "b1": 0.01 * jax.random.normal(ks[3], (sizes[1],), jnp.float32),
        "w2": lin(ks[4], sizes[1], sizes[2]),
        "b2": 0.01 * jax.random.normal(ks[5], (sizes[2],), jnp.float32),
        "w3": lin(ks[6], sizes[2], sizes[3]),
        "b3": 0.01 * jax.random.normal(ks[7], (sizes[3],), jnp.float32),
    }


if __name__ == "__main__":
    batch, num_frames, c_in, height, width = 2, 3, 4, 16, 16
    c_enc, hidden_layers, n_classes = 8, [64, 32], 3

    key = jax.random.PRNGKey(0)
    k_x, k_p = jax.random.split(key)
    x = jax.random.normal(k_x, (batch, num_frames, c_in, height, width),
                          jnp.float32)
    params = make_params(c_in, c_enc, hidden_layers, n_classes, k_p)

    fwd = jax.jit(mrinet_forward)
    out = jax.block_until_ready(fwd(x, params))
    ref = jax.block_until_ready(reference_forward(x, params))

    assert out.shape == (batch * num_frames, n_classes), out.shape
    max_err = float(jnp.max(jnp.abs(out - ref)))
    # Tolerance reflects the bf16 matmul operands requested by the perf review
    # (accumulation stays f32); both paths use the same bf16 rounding.
    assert jnp.allclose(out, ref, rtol=2e-3, atol=2e-3), max_err
    print("KERNEL_OK")
</pallas_src>

<mosaic_0001>
module attributes {stable_mosaic.version = 11 : i64} {
  func.func @mrinet_fused_kernel(%arg0: i32, %arg1: memref<1x342x4xbf16, #tpu.memory_space<vmem>>, %arg2: memref<9x4x8xbf16, #tpu.memory_space<vmem>>, %arg3: memref<1x8xf32, #tpu.memory_space<vmem>>, %arg4: memref<1x288xf32, #tpu.memory_space<vmem>>, %arg5: memref<8x64xbf16, #tpu.memory_space<vmem>>, %arg6: memref<1x64xf32, #tpu.memory_space<vmem>>, %arg7: memref<64x32xbf16, #tpu.memory_space<vmem>>, %arg8: memref<1x32xf32, #tpu.memory_space<vmem>>, %arg9: memref<32x128xbf16, #tpu.memory_space<vmem>>, %arg10: memref<1x128xf32, #tpu.memory_space<vmem>>, %arg11: memref<1x1x128xf32, #tpu.memory_space<vmem>>) attributes {dimension_semantics = [#tpu.dimension_semantics<parallel>], iteration_bounds = array<i64: 6>, scalar_prefetch = 0 : i64, scratch_operands = 0 : i64, tpu.core_type = #tpu.core_type<tc>, window_params = [{transform_indices = @transform_0, window_bounds = array<i64: 1, 342, 4>}, {pipeline_mode = #tpu.pipeline_mode<synchronous>, transform_indices = @transform_1, window_bounds = array<i64: 9, 4, 8>}, {pipeline_mode = #tpu.pipeline_mode<synchronous>, transform_indices = @transform_2, window_bounds = array<i64: 1, 8>}, {pipeline_mode = #tpu.pipeline_mode<synchronous>, transform_indices = @transform_3, window_bounds = array<i64: 1, 288>}, {pipeline_mode = #tpu.pipeline_mode<synchronous>, transform_indices = @transform_4, window_bounds = array<i64: 8, 64>}, {pipeline_mode = #tpu.pipeline_mode<synchronous>, transform_indices = @transform_5, window_bounds = array<i64: 1, 64>}, {pipeline_mode = #tpu.pipeline_mode<synchronous>, transform_indices = @transform_6, window_bounds = array<i64: 64, 32>}, {pipeline_mode = #tpu.pipeline_mode<synchronous>, transform_indices = @transform_7, window_bounds = array<i64: 1, 32>}, {pipeline_mode = #tpu.pipeline_mode<synchronous>, transform_indices = @transform_8, window_bounds = array<i64: 32, 128>}, {pipeline_mode = #tpu.pipeline_mode<synchronous>, transform_indices = @transform_9, window_bounds = array<i64: 1, 128>}, {transform_indices = @transform_10, window_bounds = array<i64: 1, 1, 128>}]} {
    %cst = arith.constant 0.000000e+00 : f32
    %0 = vector.broadcast %cst : f32 to vector<288x8xf32>
    %c0 = arith.constant 0 : index
    %c0_0 = arith.constant 0 : index
    %c0_1 = arith.constant 0 : index
    %1 = vector.load %arg1[%c0, %c0_0, %c0_1] : memref<1x342x4xbf16, #tpu.memory_space<vmem>>, vector<1x288x4xbf16>
    %2 = vector.shape_cast %1 : vector<1x288x4xbf16> to vector<288x4xbf16>
    %c0_2 = arith.constant 0 : index
    %c0_3 = arith.constant 0 : index
    %c0_4 = arith.constant 0 : index
    %3 = vector.load %arg2[%c0_2, %c0_3, %c0_4] : memref<9x4x8xbf16, #tpu.memory_space<vmem>>, vector<1x4x8xbf16>
    %4 = vector.shape_cast %3 : vector<1x4x8xbf16> to vector<4x8xbf16>
    %cst_5 = arith.constant dense<0.000000e+00> : vector<288x8xf32>
    %5 = tpu.matmul %2, %4, %cst_5 {dimension_numbers = #tpu.dot_dimension_numbers<[1], [0], [0], [1], [0, 0, 1, 1], [], []>} : vector<288x4xbf16>, vector<4x8xbf16>, vector<288x8xf32> -> vector<288x8xf32>
    %6 = arith.addf %0, %5 : vector<288x8xf32>
    %c0_6 = arith.constant 0 : index
    %c1 = arith.constant 1 : index
    %c0_7 = arith.constant 0 : index
    %7 = vector.load %arg1[%c0_6, %c1, %c0_7] : memref<1x342x4xbf16, #tpu.memory_space<vmem>>, vector<1x288x4xbf16>
    %8 = vector.shape_cast %7 : vector<1x288x4xbf16> to vector<288x4xbf16>
    %c1_8 = arith.constant 1 : index
    %c0_9 = arith.constant 0 : index
    %c0_10 = arith.constant 0 : index
    %9 = vector.load %arg2[%c1_8, %c0_9, %c0_10] : memref<9x4x8xbf16, #tpu.memory_space<vmem>>, vector<1x4x8xbf16>
    %10 = vector.shape_cast %9 : vector<1x4x8xbf16> to vector<4x8xbf16>
    %cst_11 = arith.constant dense<0.000000e+00> : vector<288x8xf32>
    %11 = tpu.matmul %8, %10, %cst_11 {dimension_numbers = #tpu.dot_dimension_numbers<[1], [0], [0], [1], [0, 0, 1, 1], [], []>} : vector<288x4xbf16>, vector<4x8xbf16>, vector<288x8xf32> -> vector<288x8xf32>
    %12 = arith.addf %6, %11 : vector<288x8xf32>
    %c0_12 = arith.constant 0 : index
    %c2 = arith.constant 2 : index
    %c0_13 = arith.constant 0 : index
    %13 = vector.load %arg1[%c0_12, %c2, %c0_13] : memref<1x342x4xbf16, #tpu.memory_space<vmem>>, vector<1x288x4xbf16>
    %14 = vector.shape_cast %13 : vector<1x288x4xbf16> to vector<288x4xbf16>
    %c2_14 = arith.constant 2 : index
    %c0_15 = arith.constant 0 : index
    %c0_16 = arith.constant 0 : index
    %15 = vector.load %arg2[%c2_14, %c0_15, %c0_16] : memref<9x4x8xbf16, #tpu.memory_space<vmem>>, vector<1x4x8xbf16>
    %16 = vector.shape_cast %15 : vector<1x4x8xbf16> to vector<4x8xbf16>
    %cst_17 = arith.constant dense<0.000000e+00> : vector<288x8xf32>
    %17 = tpu.matmul %14, %16, %cst_17 {dimension_numbers = #tpu.dot_dimension_numbers<[1], [0], [0], [1], [0, 0, 1, 1], [], []>} : vector<288x4xbf16>, vector<4x8xbf16>, vector<288x8xf32> -> vector<288x8xf32>
    %18 = arith.addf %12, %17 : vector<288x8xf32>
    %c0_18 = arith.constant 0 : index
    %c18 = arith.constant 18 : index
    %c0_19 = arith.constant 0 : index
    %19 = vector.load %arg1[%c0_18, %c18, %c0_19] : memref<1x342x4xbf16, #tpu.memory_space<vmem>>, vector<1x288x4xbf16>
    %20 = vector.shape_cast %19 : vector<1x288x4xbf16> to vector<288x4xbf16>
    %c3 = arith.constant 3 : index
    %c0_20 = arith.constant 0 : index
    %c0_21 = arith.constant 0 : index
    %21 = vector.load %arg2[%c3, %c0_20, %c0_21] : memref<9x4x8xbf16, #tpu.memory_space<vmem>>, vector<1x4x8xbf16>
    %22 = vector.shape_cast %21 : vector<1x4x8xbf16> to vector<4x8xbf16>
    %cst_22 = arith.constant dense<0.000000e+00> : vector<288x8xf32>
    %23 = tpu.matmul %20, %22, %cst_22 {dimension_numbers = #tpu.dot_dimension_numbers<[1], [0], [0], [1], [0, 0, 1, 1], [], []>} : vector<288x4xbf16>, vector<4x8xbf16>, vector<288x8xf32> -> vector<288x8xf32>
    %24 = arith.addf %18, %23 : vector<288x8xf32>
    %c0_23 = arith.constant 0 : index
    %c19 = arith.constant 19 : index
    %c0_24 = arith.constant 0 : index
    %25 = vector.load %arg1[%c0_23, %c19, %c0_24] : memref<1x342x4xbf16, #tpu.memory_space<vmem>>, vector<1x288x4xbf16>
    %26 = vector.shape_cast %25 : vector<1x288x4xbf16> to vector<288x4xbf16>
    %c4 = arith.constant 4 : index
    %c0_25 = arith.constant 0 : index
    %c0_26 = arith.constant 0 : index
    %27 = vector.load %arg2[%c4, %c0_25, %c0_26] : memref<9x4x8xbf16, #tpu.memory_space<vmem>>, vector<1x4x8xbf16>
    %28 = vector.shape_cast %27 : vector<1x4x8xbf16> to vector<4x8xbf16>
    %cst_27 = arith.constant dense<0.000000e+00> : vector<288x8xf32>
    %29 = tpu.matmul %26, %28, %cst_27 {dimension_numbers = #tpu.dot_dimension_numbers<[1], [0], [0], [1], [0, 0, 1, 1], [], []>} : vector<288x4xbf16>, vector<4x8xbf16>, vector<288x8xf32> -> vector<288x8xf32>
    %30 = arith.addf %24, %29 : vector<288x8xf32>
    %c0_28 = arith.constant 0 : index
    %c20 = arith.constant 20 : index
    %c0_29 = arith.constant 0 : index
    %31 = vector.load %arg1[%c0_28, %c20, %c0_29] : memref<1x342x4xbf16, #tpu.memory_space<vmem>>, vector<1x288x4xbf16>
    %32 = vector.shape_cast %31 : vector<1x288x4xbf16> to vector<288x4xbf16>
    %c5 = arith.constant 5 : index
    %c0_30 = arith.constant 0 : index
    %c0_31 = arith.constant 0 : index
    %33 = vector.load %arg2[%c5, %c0_30, %c0_31] : memref<9x4x8xbf16, #tpu.memory_space<vmem>>, vector<1x4x8xbf16>
    %34 = vector.shape_cast %33 : vector<1x4x8xbf16> to vector<4x8xbf16>
    %cst_32 = arith.constant dense<0.000000e+00> : vector<288x8xf32>
    %35 = tpu.matmul %32, %34, %cst_32 {dimension_numbers = #tpu.dot_dimension_numbers<[1], [0], [0], [1], [0, 0, 1, 1], [], []>} : vector<288x4xbf16>, vector<4x8xbf16>, vector<288x8xf32> -> vector<288x8xf32>
    %36 = arith.addf %30, %35 : vector<288x8xf32>
    %c0_33 = arith.constant 0 : index
    %c36 = arith.constant 36 : index
    %c0_34 = arith.constant 0 : index
    %37 = vector.load %arg1[%c0_33, %c36, %c0_34] : memref<1x342x4xbf16, #tpu.memory_space<vmem>>, vector<1x288x4xbf16>
    %38 = vector.shape_cast %37 : vector<1x288x4xbf16> to vector<288x4xbf16>
    %c6 = arith.constant 6 : index
    %c0_35 = arith.constant 0 : index
    %c0_36 = arith.constant 0 : index
    %39 = vector.load %arg2[%c6, %c0_35, %c0_36] : memref<9x4x8xbf16, #tpu.memory_space<vmem>>, vector<1x4x8xbf16>
    %40 = vector.shape_cast %39 : vector<1x4x8xbf16> to vector<4x8xbf16>
    %cst_37 = arith.constant dense<0.000000e+00> : vector<288x8xf32>
    %41 = tpu.matmul %38, %40, %cst_37 {dimension_numbers = #tpu.dot_dimension_numbers<[1], [0], [0], [1], [0, 0, 1, 1], [], []>} : vector<288x4xbf16>, vector<4x8xbf16>, vector<288x8xf32> -> vector<288x8xf32>
    %42 = arith.addf %36, %41 : vector<288x8xf32>
    %c0_38 = arith.constant 0 : index
    %c37 = arith.constant 37 : index
    %c0_39 = arith.constant 0 : index
    %43 = vector.load %arg1[%c0_38, %c37, %c0_39] : memref<1x342x4xbf16, #tpu.memory_space<vmem>>, vector<1x288x4xbf16>
    %44 = vector.shape_cast %43 : vector<1x288x4xbf16> to vector<288x4xbf16>
    %c7 = arith.constant 7 : index
    %c0_40 = arith.constant 0 : index
    %c0_41 = arith.constant 0 : index
    %45 = vector.load %arg2[%c7, %c0_40, %c0_41] : memref<9x4x8xbf16, #tpu.memory_space<vmem>>, vector<1x4x8xbf16>
    %46 = vector.shape_cast %45 : vector<1x4x8xbf16> to vector<4x8xbf16>
    %cst_42 = arith.constant dense<0.000000e+00> : vector<288x8xf32>
    %47 = tpu.matmul %44, %46, %cst_42 {dimension_numbers = #tpu.dot_dimension_numbers<[1], [0], [0], [1], [0, 0, 1, 1], [], []>} : vector<288x4xbf16>, vector<4x8xbf16>, vector<288x8xf32> -> vector<288x8xf32>
    %48 = arith.addf %42, %47 : vector<288x8xf32>
    %c0_43 = arith.constant 0 : index
    %c38 = arith.constant 38 : index
    %c0_44 = arith.constant 0 : index
    %49 = vector.load %arg1[%c0_43, %c38, %c0_44] : memref<1x342x4xbf16, #tpu.memory_space<vmem>>, vector<1x288x4xbf16>
    %50 = vector.shape_cast %49 : vector<1x288x4xbf16> to vector<288x4xbf16>
    %c8 = arith.constant 8 : index
    %c0_45 = arith.constant 0 : index
    %c0_46 = arith.constant 0 : index
    %51 = vector.load %arg2[%c8, %c0_45, %c0_46] : memref<9x4x8xbf16, #tpu.memory_space<vmem>>, vector<1x4x8xbf16>
    %52 = vector.shape_cast %51 : vector<1x4x8xbf16> to vector<4x8xbf16>
    %cst_47 = arith.constant dense<0.000000e+00> : vector<288x8xf32>
    %53 = tpu.matmul %50, %52, %cst_47 {dimension_numbers = #tpu.dot_dimension_numbers<[1], [0], [0], [1], [0, 0, 1, 1], [], []>} : vector<288x4xbf16>, vector<4x8xbf16>, vector<288x8xf32> -> vector<288x8xf32>
    %54 = arith.addf %48, %53 : vector<288x8xf32>
    %c0_48 = arith.constant 0 : index
    %c0_49 = arith.constant 0 : index
    %55 = vector.load %arg3[%c0_48, %c0_49] : memref<1x8xf32, #tpu.memory_space<vmem>>, vector<1x8xf32>
    %56 = vector.broadcast %55 : vector<1x8xf32> to vector<288x8xf32>
    %57 = arith.addf %54, %56 : vector<288x8xf32>
    %cst_50 = arith.constant 0.000000e+00 : f32
    %58 = vector.broadcast %cst_50 : f32 to vector<288x8xf32>
    %59 = arith.maximumf %57, %58 : vector<288x8xf32>
    %c0_51 = arith.constant 0 : index
    %c0_52 = arith.constant 0 : index
    %60 = vector.load %arg4[%c0_51, %c0_52] : memref<1x288xf32, #tpu.memory_space<vmem>>, vector<1x288xf32>
    %cst_53 = arith.constant dense<0.000000e+00> : vector<1x8xf32>
    %61 = tpu.matmul %60, %59, %cst_53 {dimension_numbers = #tpu.dot_dimension_numbers<[1], [0], [0], [1], [0, 0, 1, 1], [], []>} : vector<1x288xf32>, vector<288x8xf32>, vector<1x8xf32> -> vector<1x8xf32>
    %62 = arith.truncf %61 : vector<1x8xf32> to vector<1x8xbf16>
    %c0_54 = arith.constant 0 : index
    %c0_55 = arith.constant 0 : index
    %63 = vector.load %arg5[%c0_54, %c0_55] : memref<8x64xbf16, #tpu.memory_space<vmem>>, vector<8x64xbf16>
    %cst_56 = arith.constant dense<0.000000e+00> : vector<1x64xf32>
    %64 = tpu.matmul %62, %63, %cst_56 {dimension_numbers = #tpu.dot_dimension_numbers<[1], [0], [0], [1], [0, 0, 1, 1], [], []>} : vector<1x8xbf16>, vector<8x64xbf16>, vector<1x64xf32> -> vector<1x64xf32>
    %c0_57 = arith.constant 0 : index
    %c0_58 = arith.constant 0 : index
    %65 = vector.load %arg6[%c0_57, %c0_58] : memref<1x64xf32, #tpu.memory_space<vmem>>, vector<1x64xf32>
    %66 = arith.addf %64, %65 : vector<1x64xf32>
    %cst_59 = arith.constant 0.000000e+00 : f32
    %67 = vector.broadcast %cst_59 : f32 to vector<1x64xf32>
    %68 = arith.maximumf %66, %67 : vector<1x64xf32>
    %69 = arith.truncf %68 : vector<1x64xf32> to vector<1x64xbf16>
    %c0_60 = arith.constant 0 : index
    %c0_61 = arith.constant 0 : index
    %70 = vector.load %arg7[%c0_60, %c0_61] : memref<64x32xbf16, #tpu.memory_space<vmem>>, vector<64x32xbf16>
    %cst_62 = arith.constant dense<0.000000e+00> : vector<1x32xf32>
    %71 = tpu.matmul %69, %70, %cst_62 {dimension_numbers = #tpu.dot_dimension_numbers<[1], [0], [0], [1], [0, 0, 1, 1], [], []>} : vector<1x64xbf16>, vector<64x32xbf16>, vector<1x32xf32> -> vector<1x32xf32>
    %c0_63 = arith.constant 0 : index
    %c0_64 = arith.constant 0 : index
    %72 = vector.load %arg8[%c0_63, %c0_64] : memref<1x32xf32, #tpu.memory_space<vmem>>, vector<1x32xf32>
    %73 = arith.addf %71, %72 : vector<1x32xf32>
    %cst_65 = arith.constant 0.000000e+00 : f32
    %74 = vector.broadcast %cst_65 : f32 to vector<1x32xf32>
    %75 = arith.maximumf %73, %74 : vector<1x32xf32>
    %76 = arith.truncf %75 : vector<1x32xf32> to vector<1x32xbf16>
    %c0_66 = arith.constant 0 : index
    %c0_67 = arith.constant 0 : index
    %77 = vector.load %arg9[%c0_66, %c0_67] : memref<32x128xbf16, #tpu.memory_space<vmem>>, vector<32x128xbf16>
    %cst_68 = arith.constant dense<0.000000e+00> : vector<1x128xf32>
    %78 = tpu.matmul %76, %77, %cst_68 {dimension_numbers = #tpu.dot_dimension_numbers<[1], [0], [0], [1], [0, 0, 1, 1], [], []>} : vector<1x32xbf16>, vector<32x128xbf16>, vector<1x128xf32> -> vector<1x128xf32>
    %c0_69 = arith.constant 0 : index
    %c0_70 = arith.constant 0 : index
    %79 = vector.load %arg10[%c0_69, %c0_70] : memref<1x128xf32, #tpu.memory_space<vmem>>, vector<1x128xf32>
    %80 = arith.addf %78, %79 : vector<1x128xf32>
    %cst_71 = arith.constant 0.000000e+00 : f32
    %81 = vector.broadcast %cst_71 : f32 to vector<1x128xf32>
    %82 = arith.maximumf %80, %81 : vector<1x128xf32>
    %c0_72 = arith.constant 0 : index
    %c0_73 = arith.constant 0 : index
    %c0_74 = arith.constant 0 : index
    %83 = vector.load %arg11[%c0_72, %c0_73, %c0_74] : memref<1x1x128xf32, #tpu.memory_space<vmem>>, vector<1x1x128xf32>
    %84 = vector.shape_cast %83 : vector<1x1x128xf32> to vector<1x128xf32>
    %85 = vector.shape_cast %82 : vector<1x128xf32> to vector<1x1x128xf32>
    tpu.vector_store %arg11[%c0_72, %c0_73, %c0_74], %85 {strides = array<i32>} : memref<1x1x128xf32, #tpu.memory_space<vmem>>, vector<1x1x128xf32>,
    return
  }
  func.func @transform_0(%arg0: i32) -> (i32, i32, i32) {
    %c0_i32 = arith.constant 0 : i32
    %c0_i32_0 = arith.constant 0 : i32
    %c0_i32_1 = arith.constant 0 : i32
    return %arg0, %c0_i32, %c0_i32_0 : i32, i32, i32
  }
  func.func @transform_1(%arg0: i32) -> (i32, i32, i32) {
    %c0_i32 = arith.constant 0 : i32
    %c0_i32_0 = arith.constant 0 : i32
    %c0_i32_1 = arith.constant 0 : i32
    %c0_i32_2 = arith.constant 0 : i32
    return %c0_i32, %c0_i32_0, %c0_i32_1 : i32, i32, i32
  }
  func.func @transform_2(%arg0: i32) -> (i32, i32) {
    %c0_i32 = arith.constant 0 : i32
    %c0_i32_0 = arith.constant 0 : i32
    %c0_i32_1 = arith.constant 0 : i32
    return %c0_i32, %c0_i32_0 : i32, i32
  }
  func.func @transform_3(%arg0: i32) -> (i32, i32) {
    %c0_i32 = arith.constant 0 : i32
    %c0_i32_0 = arith.constant 0 : i32
    %c0_i32_1 = arith.constant 0 : i32
    return %c0_i32, %c0_i32_0 : i32, i32
  }
  func.func @transform_4(%arg0: i32) -> (i32, i32) {
    %c0_i32 = arith.constant 0 : i32
    %c0_i32_0 = arith.constant 0 : i32
    %c0_i32_1 = arith.constant 0 : i32
    return %c0_i32, %c0_i32_0 : i32, i32
  }
  func.func @transform_5(%arg0: i32) -> (i32, i32) {
    %c0_i32 = arith.constant 0 : i32
    %c0_i32_0 = arith.constant 0 : i32
    %c0_i32_1 = arith.constant 0 : i32
    return %c0_i32, %c0_i32_0 : i32, i32
  }
  func.func @transform_6(%arg0: i32) -> (i32, i32) {
    %c0_i32 = arith.constant 0 : i32
    %c0_i32_0 = arith.constant 0 : i32
    %c0_i32_1 = arith.constant 0 : i32
    return %c0_i32, %c0_i32_0 : i32, i32
  }
  func.func @transform_7(%arg0: i32) -> (i32, i32) {
    %c0_i32 = arith.constant 0 : i32
    %c0_i32_0 = arith.constant 0 : i32
    %c0_i32_1 = arith.constant 0 : i32
    return %c0_i32, %c0_i32_0 : i32, i32
  }
  func.func @transform_8(%arg0: i32) -> (i32, i32) {
    %c0_i32 = arith.constant 0 : i32
    %c0_i32_0 = arith.constant 0 : i32
    %c0_i32_1 = arith.constant 0 : i32
    return %c0_i32, %c0_i32_0 : i32, i32
  }
  func.func @transform_9(%arg0: i32) -> (i32, i32) {
    %c0_i32 = arith.constant 0 : i32
    %c0_i32_0 = arith.constant 0 : i32
    %c0_i32_1 = arith.constant 0 : i32
    return %c0_i32, %c0_i32_0 : i32, i32
  }
  func.func @transform_10(%arg0: i32) -> (i32, i32, i32) {
    %c0_i32 = arith.constant 0 : i32
    %c0_i32_0 = arith.constant 0 : i32
    %c0_i32_1 = arith.constant 0 : i32
    return %arg0, %c0_i32, %c0_i32_0 : i32, i32, i32
  }
}

</mosaic_0001>

<llo_original>
// kernel: mrinet_forward.1
$region0: #{mrinet_forward.1}
  #allocation0 [shape = 'u32[]', space=smem, size = 0x4, offset = 0x4, fixed_abs, tag = 'smem constant byte address 0x4 - core index']
  #allocation1 [shape = 'u32[72,128]{1,0:T(1,128)}', space=vmem, size = 0x9000, scoped, tag = 'internal scratch']
  %s0 = inlined_call_operand.vmem [shape: bf16[6,342,4], index: 0, kind: input, shape index: {}]
  %s1 = inlined_call_operand.vmem [shape: bf16[9,4,8], index: 1, kind: input, shape index: {}]
  %s2 = inlined_call_operand.vmem [shape: f32[1,8], index: 2, kind: input, shape index: {}]
  %s3 = inlined_call_operand.vmem [shape: f32[1,288], index: 3, kind: input, shape index: {}]
  %s4 = inlined_call_operand.vmem [shape: bf16[8,64], index: 4, kind: input, shape index: {}]
  %s5 = inlined_call_operand.vmem [shape: f32[1,64], index: 5, kind: input, shape index: {}]
  %s6 = inlined_call_operand.vmem [shape: bf16[64,32], index: 6, kind: input, shape index: {}]
  %s7 = inlined_call_operand.vmem [shape: f32[1,32], index: 7, kind: input, shape index: {}]
  %s8 = inlined_call_operand.vmem [shape: bf16[32,128], index: 8, kind: input, shape index: {}]
  %s9 = inlined_call_operand.vmem [shape: f32[1,128], index: 9, kind: input, shape index: {}]
  %s10 = inlined_call_operand.vmem [shape: f32[6,1,128], index: 10, kind: output, shape index: {}]
  %s11 = sld [smem:[#allocation0]]
  $region73: #{mrinet_forward.1} parent=0
    _
  %s13 = ssub.s32 1, %s11
  %s14 = scalar_select 0, %s13, %s11
  loop: start=0, step=1, limit=8
  $region2: #{mrinet_forward.1} parent=0 // loop_pre_header
    _
  $region3: #{mrinet_forward.1} parent=0 // loop_header
    %s16 = sphi 0, %s20
    %p17 = scmp.ge.s32.totalorder %s16, 8
    %s26 = sphi 0, %s28
    %s29 = sphi 0, %s26
    %s30 = sphi 0, %s29
    %s46 = sphi 0, %s30
    %s50 = sphi 0, %s50
    %s52 = sphi 0, %s50
    %s53 = sphi 0, %s52
    %s67 = sphi 0, %s53
    %s71 = sphi 0, %s71
    %s73 = sphi 0, %s71
    %s74 = sphi 0, %s73
    %s88 = sphi 0, %s74
    %s92 = sphi 0, %s92
    %s94 = sphi 0, %s92
    %s95 = sphi 0, %s94
    %s109 = sphi 0, %s95
    %s113 = sphi 0, %s113
    %s115 = sphi 0, %s113
    %s116 = sphi 0, %s115
    %s130 = sphi 0, %s116
    %s134 = sphi 0, %s134
    %s136 = sphi 0, %s134
    %s137 = sphi 0, %s136
    %s151 = sphi 0, %s137
    %s155 = sphi 0, %s155
    %s157 = sphi 0, %s155
    %s158 = sphi 0, %s157
    %s172 = sphi 0, %s158
    %s176 = sphi 0, %s176
    %s178 = sphi 0, %s176
    %s179 = sphi 0, %s178
    %s193 = sphi 0, %s179
    %s197 = sphi 0, %s197
    %s199 = sphi 0, %s197
    %s200 = sphi 0, %s199
    %s214 = sphi 0, %s200
    %s218 = sphi 0, %s218
    %s220 = sphi 0, %s218
    %s221 = sphi 0, %s220
    %s235 = sphi 0, %s221
    %s241 = sphi 0, %s243
    %s244 = sphi 0, %s241
    %s245 = sphi 0, %s244
    %s261 = sphi 0, %s245
  $region4: #{mrinet_forward.1} parent=0 // loop_header_branch
    %19 = sbr.rel (%p17) target = $region8
  $region5: #{mrinet_forward.1} parent=0 // loop_body
    %s21 = ssub.s32 %s16, 1
    %s22 = ssub.s32 %s16, 2
    %s23 = sadd.s32 %s16, 1
    %s24 = ssub.s32 %s16, %s23
    %p25 = scmp.eq.s32.totalorder %s24, 0
    %s27 = sadd.s32 %s26, 1
    %s28 = scalar_select %p25, %s26, %s27
    %p31 = pneg %p25
    %p32 = scmp.eq.s32.totalorder %s16, 5
    %p33 = por %p31, %p32
    %p34 = scmp.ne.s32.totalorder %s26, %s29
    %p35 = scmp.eq.s32.totalorder %s16, 0
    %p36 = por %p34, %p35
    %p37 = scmp.ne.s32.totalorder %s26, %s29
    %p38 = scmp.eq.s32.totalorder %s21, 5
    %p39 = por %p37, %p38
    %p40 = scmp.ne.s32.totalorder %s29, %s30
    %p41 = scmp.eq.s32.totalorder %s21, 0
    %p42 = por %p40, %p41
    %p43 = scmp.ne.s32.totalorder %s29, %s30
    %p44 = scmp.eq.s32.totalorder %s22, 5
    %p45 = por %p43, %p44
    %p47 = scmp.ne.s32.totalorder %s30, %s46
    %p48 = scmp.eq.s32.totalorder %s22, 0
    %p49 = por %p47, %p48
    %s51 = sadd.s32 %s50, 1
    %p54 = scmp.eq.s32.totalorder %s16, 5
    %p55 = scmp.ne.s32.totalorder %s50, %s52
    %p56 = scmp.eq.s32.totalorder %s16, 0
    %p57 = por %p55, %p56
    %p58 = scmp.ne.s32.totalorder %s50, %s52
    %p59 = scmp.eq.s32.totalorder %s21, 5
    %p60 = por %p58, %p59
    %p61 = scmp.ne.s32.totalorder %s52, %s53
    %p62 = scmp.eq.s32.totalorder %s21, 0
    %p63 = por %p61, %p62
    %p64 = scmp.ne.s32.totalorder %s52, %s53
    %p65 = scmp.eq.s32.totalorder %s22, 5
    %p66 = por %p64, %p65
    %p68 = scmp.ne.s32.totalorder %s53, %s67
    %p69 = scmp.eq.s32.totalorder %s22, 0
    %p70 = por %p68, %p69
    %s72 = sadd.s32 %s71, 1
    %p75 = scmp.eq.s32.totalorder %s16, 5
    %p76 = scmp.ne.s32.totalorder %s71, %s73
    %p77 = scmp.eq.s32.totalorder %s16, 0
    %p78 = por %p76, %p77
    %p79 = scmp.ne.s32.totalorder %s71, %s73
    %p80 = scmp.eq.s32.totalorder %s21, 5
    %p81 = por %p79, %p80
    %p82 = scmp.ne.s32.totalorder %s73, %s74
    %p83 = scmp.eq.s32.totalorder %s21, 0
    %p84 = por %p82, %p83
    %p85 = scmp.ne.s32.totalorder %s73, %s74
    %p86 = scmp.eq.s32.totalorder %s22, 5
    %p87 = por %p85, %p86
    %p89 = scmp.ne.s32.totalorder %s74, %s88
    %p90 = scmp.eq.s32.totalorder %s22, 0
    %p91 = por %p89, %p90
    %s93 = sadd.s32 %s92, 1
    %p96 = scmp.eq.s32.totalorder %s16, 5
    %p97 = scmp.ne.s32.totalorder %s92, %s94
    %p98 = scmp.eq.s32.totalorder %s16, 0
    %p99 = por %p97, %p98
    %p100 = scmp.ne.s32.totalorder %s92, %s94
    %p101 = scmp.eq.s32.totalorder %s21, 5
    %p102 = por %p100, %p101
    %p103 = scmp.ne.s32.totalorder %s94, %s95
    %p104 = scmp.eq.s32.totalorder %s21, 0
    %p105 = por %p103, %p104
    %p106 = scmp.ne.s32.totalorder %s94, %s95
    %p107 = scmp.eq.s32.totalorder %s22, 5
    %p108 = por %p106, %p107
    %p110 = scmp.ne.s32.totalorder %s95, %s109
    %p111 = scmp.eq.s32.totalorder %s22, 0
    %p112 = por %p110, %p111
    %s114 = sadd.s32 %s113, 1
    %p117 = scmp.eq.s32.totalorder %s16, 5
    %p118 = scmp.ne.s32.totalorder %s113, %s115
    %p119 = scmp.eq.s32.totalorder %s16, 0
    %p120 = por %p118, %p119
    %p121 = scmp.ne.s32.totalorder %s113, %s115
    %p122 = scmp.eq.s32.totalorder %s21, 5
    %p123 = por %p121, %p122
    %p124 = scmp.ne.s32.totalorder %s115, %s116
    %p125 = scmp.eq.s32.totalorder %s21, 0
    %p126 = por %p124, %p125
    %p127 = scmp.ne.s32.totalorder %s115, %s116
    %p128 = scmp.eq.s32.totalorder %s22, 5
    %p129 = por %p127, %p128
    %p131 = scmp.ne.s32.totalorder %s116, %s130
    %p132 = scmp.eq.s32.totalorder %s22, 0
    %p133 = por %p131, %p132
    %s135 = sadd.s32 %s134, 1
    %p138 = scmp.eq.s32.totalorder %s16, 5
    %p139 = scmp.ne.s32.totalorder %s134, %s136
    %p140 = scmp.eq.s32.totalorder %s16, 0
    %p141 = por %p139, %p140
    %p142 = scmp.ne.s32.totalorder %s134, %s136
    %p143 = scmp.eq.s32.totalorder %s21, 5
    %p144 = por %p142, %p143
    %p145 = scmp.ne.s32.totalorder %s136, %s137
    %p146 = scmp.eq.s32.totalorder %s21, 0
    %p147 = por %p145, %p146
    %p148 = scmp.ne.s32.totalorder %s136, %s137
    %p149 = scmp.eq.s32.totalorder %s22, 5
    %p150 = por %p148, %p149
    %p152 = scmp.ne.s32.totalorder %s137, %s151
    %p153 = scmp.eq.s32.totalorder %s22, 0
    %p154 = por %p152, %p153
    %s156 = sadd.s32 %s155, 1
    %p159 = scmp.eq.s32.totalorder %s16, 5
    %p160 = scmp.ne.s32.totalorder %s155, %s157
    %p161 = scmp.eq.s32.totalorder %s16, 0
    %p162 = por %p160, %p161
    %p163 = scmp.ne.s32.totalorder %s155, %s157
    %p164 = scmp.eq.s32.totalorder %s21, 5
    %p165 = por %p163, %p164
    %p166 = scmp.ne.s32.totalorder %s157, %s158
    %p167 = scmp.eq.s32.totalorder %s21, 0
    %p168 = por %p166, %p167
    %p169 = scmp.ne.s32.totalorder %s157, %s158
    %p170 = scmp.eq.s32.totalorder %s22, 5
    %p171 = por %p169, %p170
    %p173 = scmp.ne.s32.totalorder %s158, %s172
    %p174 = scmp.eq.s32.totalorder %s22, 0
    %p175 = por %p173, %p174
    %s177 = sadd.s32 %s176, 1
    %p180 = scmp.eq.s32.totalorder %s16, 5
    %p181 = scmp.ne.s32.totalorder %s176, %s178
    %p182 = scmp.eq.s32.totalorder %s16, 0
    %p183 = por %p181, %p182
    %p184 = scmp.ne.s32.totalorder %s176, %s178
    %p185 = scmp.eq.s32.totalorder %s21, 5
    %p186 = por %p184, %p185
    %p187 = scmp.ne.s32.totalorder %s178, %s179
    %p188 = scmp.eq.s32.totalorder %s21, 0
    %p189 = por %p187, %p188
    %p190 = scmp.ne.s32.totalorder %s178, %s179
    %p191 = scmp.eq.s32.totalorder %s22, 5
    %p192 = por %p190, %p191
    %p194 = scmp.ne.s32.totalorder %s179, %s193
    %p195 = scmp.eq.s32.totalorder %s22, 0
    %p196 = por %p194, %p195
    %s198 = sadd.s32 %s197, 1
    %p201 = scmp.eq.s32.totalorder %s16, 5
    %p202 = scmp.ne.s32.totalorder %s197, %s199
    %p203 = scmp.eq.s32.totalorder %s16, 0
    %p204 = por %p202, %p203
    %p205 = scmp.ne.s32.totalorder %s197, %s199
    %p206 = scmp.eq.s32.totalorder %s21, 5
    %p207 = por %p205, %p206
    %p208 = scmp.ne.s32.totalorder %s199, %s200
    %p209 = scmp.eq.s32.totalorder %s21, 0
    %p210 = por %p208, %p209
    %p211 = scmp.ne.s32.totalorder %s199, %s200
    %p212 = scmp.eq.s32.totalorder %s22, 5
    %p213 = por %p211, %p212
    %p215 = scmp.ne.s32.totalorder %s200, %s214
    %p216 = scmp.eq.s32.totalorder %s22, 0
    %p217 = por %p215, %p216
    %s219 = sadd.s32 %s218, 1
    %p222 = scmp.eq.s32.totalorder %s16, 5
    %p223 = scmp.ne.s32.totalorder %s218, %s220
    %p224 = scmp.eq.s32.totalorder %s16, 0
    %p225 = por %p223, %p224
    %p226 = scmp.ne.s32.totalorder %s218, %s220
    %p227 = scmp.eq.s32.totalorder %s21, 5
    %p228 = por %p226, %p227
    %p229 = scmp.ne.s32.totalorder %s220, %s221
    %p230 = scmp.eq.s32.totalorder %s21, 0
    %p231 = por %p229, %p230
    %p232 = scmp.ne.s32.totalorder %s220, %s221
    %p233 = scmp.eq.s32.totalorder %s22, 5
    %p234 = por %p232, %p233
    %p236 = scmp.ne.s32.totalorder %s221, %s235
    %p237 = scmp.eq.s32.totalorder %s22, 0
    %p238 = por %p236, %p237
    %s239 = ssub.s32 %s16, %s23
    %p240 = scmp.eq.s32.totalorder %s239, 0
    %s242 = sadd.s32 %s241, 1
    %s243 = scalar_select %p240, %s241, %s242
    %p246 = pneg %p240
    %p247 = scmp.eq.s32.totalorder %s16, 5
    %p248 = por %p246, %p247
    %p249 = scmp.ne.s32.totalorder %s241, %s244
    %p250 = scmp.eq.s32.totalorder %s16, 0
    %p251 = por %p249, %p250
    %p252 = scmp.ne.s32.totalorder %s241, %s244
    %p253 = scmp.eq.s32.totalorder %s21, 5
    %p254 = por %p252, %p253
    %p255 = scmp.ne.s32.totalorder %s244, %s245
    %p256 = scmp.eq.s32.totalorder %s21, 0
    %p257 = por %p255, %p256
    %p258 = scmp.ne.s32.totalorder %s244, %s245
    %p259 = scmp.eq.s32.totalorder %s22, 5
    %p260 = por %p258, %p259
    %p262 = scmp.ne.s32.totalorder %s245, %s261
    %p263 = scmp.eq.s32.totalorder %s22, 0
    %p264 = por %p262, %p263
    %p265 = scmp.le.s32.totalorder 1, %s16
    %p266 = scmp.lt.s32.totalorder %s16, 7
    %p267 = pnand %p265, %p266
    %p268 = pneg %p267
    // Predicated region
    $region9: #{mrinet_forward.1} parent=5 // pred_check
      _
    $region10: #{mrinet_forward.1} parent=5 // pred_check_branch
      %270 = sbr.rel (%p267) target = $region12
    $region11: #{mrinet_forward.1} parent=5 // pred_region
      %s271 = ssub.s32 %s16, 1
      // Predicated region
      $region13: #{mrinet_forward.1} parent=11 // pred_check
        %p272 = pneg %p63
      $region14: #{mrinet_forward.1} parent=11 // pred_check_branch
        %274 = sbr.rel (%p272) target = $region16
      $region15: #{mrinet_forward.1} parent=11 // pred_region
        _
      $region16: #{mrinet_forward.1} parent=11 // pred_fallthru
        _
      // Predicated region
      $region17: #{mrinet_forward.1} parent=11 // pred_check
        %p275 = pneg %p84
      $region18: #{mrinet_forward.1} parent=11 // pred_check_branch
        %277 = sbr.rel (%p275) target = $region20
      $region19: #{mrinet_forward.1} parent=11 // pred_region
        _
      $region20: #{mrinet_forward.1} parent=11 // pred_fallthru
        _
      // Predicated region
      $region21: #{mrinet_forward.1} parent=11 // pred_check
        %p278 = pneg %p105
      $region22: #{mrinet_forward.1} parent=11 // pred_check_branch
        %280 = sbr.rel (%p278) target = $region24
      $region23: #{mrinet_forward.1} parent=11 // pred_region
        _
      $region24: #{mrinet_forward.1} parent=11 // pred_fallthru
        _
      // Predicated region
      $region25: #{mrinet_forward.1} parent=11 // pred_check
        %p281 = pneg %p126
      $region26: #{mrinet_forward.1} parent=11 // pred_check_branch
        %283 = sbr.rel (%p281) target = $region28
      $region27: #{mrinet_forward.1} parent=11 // pred_region
        _
      $region28: #{mrinet_forward.1} parent=11 // pred_fallthru
        _
      // Predicated region
      $region29: #{mrinet_forward.1} parent=11 // pred_check
        %p284 = pneg %p147
      $region30: #{mrinet_forward.1} parent=11 // pred_check_branch
        %286 = sbr.rel (%p284) target = $region32
      $region31: #{mrinet_forward.1} parent=11 // pred_region
        _
      $region32: #{mrinet_forward.1} parent=11 // pred_fallthru
        _
      // Predicated region
      $region33: #{mrinet_forward.1} parent=11 // pred_check
        %p287 = pneg %p168
      $region34: #{mrinet_forward.1} parent=11 // pred_check_branch
        %289 = sbr.rel (%p287) target = $region36
      $region35: #{mrinet_forward.1} parent=11 // pred_region
        _
      $region36: #{mrinet_forward.1} parent=11 // pred_fallthru
        _
      // Predicated region
      $region37: #{mrinet_forward.1} parent=11 // pred_check
        %p290 = pneg %p189
      $region38: #{mrinet_forward.1} parent=11 // pred_check_branch
        %292 = sbr.rel (%p290) target = $region40
      $region39: #{mrinet_forward.1} parent=11 // pred_region
        _
      $region40: #{mrinet_forward.1} parent=11 // pred_fallthru
        _
      // Predicated region
      $region41: #{mrinet_forward.1} parent=11 // pred_check
        %p293 = pneg %p210
      $region42: #{mrinet_forward.1} parent=11 // pred_check_branch
        %295 = sbr.rel (%p293) target = $region44
      $region43: #{mrinet_forward.1} parent=11 // pred_region
        _
      $region44: #{mrinet_forward.1} parent=11 // pred_fallthru
        _
      // Predicated region
      $region45: #{mrinet_forward.1} parent=11 // pred_check
        %p296 = pneg %p231
      $region46: #{mrinet_forward.1} parent=11 // pred_check_branch
        %298 = sbr.rel (%p296) target = $region48
      $region47: #{mrinet_forward.1} parent=11 // pred_region
        _
      $region48: #{mrinet_forward.1} parent=11 // pred_fallthru
        _
    $region12: #{mrinet_forward.1} parent=5 // pred_fallthru
      _
    %p299 = scmp.lt.s32.totalorder %s16, 6
    // Predicated region
    $region49: #{mrinet_forward.1} parent=5 // pred_check
      %p300 = pneg %p299
    $region50: #{mrinet_forward.1} parent=5 // pred_check_branch
      %302 = sbr.rel (%p300) target = $region52
    $region51: #{mrinet_forward.1} parent=5 // pred_region
      // Predicated region
      $region53: #{mrinet_forward.1} parent=51 // pred_check
        %p303 = pneg %p36
      $region54: #{mrinet_forward.1} parent=51 // pred_check_branch
        %305 = sbr.rel (%p303) target = $region56
      $region55: #{mrinet_forward.1} parent=51 // pred_region
        %p306 = scmp.lt.s32.totalorder %s16, 5
        %s307 = scalar_select %p306, %s16, 5
        %s308 = smul.addr %s307, 43
        %s309 = smul.addr %s308, 4
        %s310 = scalar_lea.vmem %s0, %s309
      $region56: #{mrinet_forward.1} parent=51 // pred_fallthru
        _
    $region52: #{mrinet_forward.1} parent=5 // pred_fallthru
      _
    %p311 = scmp.le.s32.totalorder 1, %s16
    %p312 = scmp.lt.s32.totalorder %s16, 7
    %p313 = pnand %p311, %p312
    %p314 = pneg %p313
    // Predicated region
    $region57: #{mrinet_forward.1} parent=5 // pred_check
      _
    $region58: #{mrinet_forward.1} parent=5 // pred_check_branch
      %316 = sbr.rel (%p313) target = $region60
    $region59: #{mrinet_forward.1} parent=5 // pred_region
      %s317 = ssub.s32 %s16, 1
      %p318 = scmp.lt.s32.totalorder %s21, 5
      %s319 = scalar_select %p318, %s21, 5
      %s320 = smul.addr %s319, 43
      %s321 = smul.addr %s320, 4
      %s322 = scalar_lea.vmem %s0, %s321
      %p323 = pneg %p42
      %p324 = pneg %p39
      %p325 = pneg %p63
      %p326 = pneg %p60
      %p327 = pneg %p84
      %p328 = pneg %p81
      %p329 = pneg %p105
      %p330 = pneg %p102
      %p331 = pneg %p126
      %p332 = pneg %p123
      %p333 = pneg %p147
      %p334 = pneg %p144
      %p335 = pneg %p168
      %p336 = pneg %p165
      %p337 = pneg %p189
      %p338 = pneg %p186
      %p339 = pneg %p210
      %p340 = pneg %p207
      %p341 = pneg %p231
      %p342 = pneg %p228
      %p343 = pneg %p257
      %p344 = pneg %p254
      %p345 = scmp.lt.s32.totalorder %s21, 5
      %s346 = scalar_select %p345, %s21, 5
      %s347 = scalar_lea.vmem %s10, %s346
      %p348 = scmp.lt.s32.totalorder %s21, 5
      %s349 = scalar_select %p348, %s21, 5
      %s350 = smul.addr %s349, 43
      %s351 = smul.addr %s350, 4
      %s352 = scalar_lea.vmem %s0, %s351
      %p353 = scmp.lt.s32.totalorder %s21, 5
      %s354 = scalar_select %p353, %s21, 5
      %s355 = scalar_lea.vmem %s10, %s354
      %v357 = vld [vmem:[%s352] sm:$0xf]
      %v358 = vld [vmem:[%s352 + $0x4] sm:$0xf]
      %v359 = vld [vmem:[%s352 + $0x8] sm:$0xf]
      %v360 = vld [vmem:[%s352 + $0xc] sm:$0xf]
      %v361 = vld [vmem:[%s352 + $0x10] sm:$0xf]
      %v362 = vld [vmem:[%s352 + $0x14] sm:$0xf]
      %v363 = vld [vmem:[%s352 + $0x18] sm:$0xf]
      %v364 = vld [vmem:[%s352 + $0x1c] sm:$0xf]
      %v365 = vld [vmem:[%s352 + $0x20] sm:$0xf]
      %v366 = vld [vmem:[%s352 + $0x24] sm:$0xf]
      %v367 = vld [vmem:[%s352 + $0x28] sm:$0xf]
      %v368 = vld [vmem:[%s352 + $0x2c] sm:$0xf]
      %v369 = vld [vmem:[%s352 + $0x30] sm:$0xf]
      %v370 = vld [vmem:[%s352 + $0x34] sm:$0xf]
      %v371 = vld [vmem:[%s352 + $0x38] sm:$0xf]
      %v372 = vld [vmem:[%s352 + $0x3c] sm:$0xf]
      %v373 = vld [vmem:[%s352 + $0x40] sm:$0xf]
      %v374 = vld [vmem:[%s352 + $0x44] sm:$0xf]
      %v375 = vld [vmem:[%s352 + $0x48] sm:$0xf]
      %v376 = vld [vmem:[%s352 + $0x4c] sm:$0xf]
      %v377 = vld [vmem:[%s352 + $0x50] sm:$0xf]
      %v378 = vld [vmem:[%s352 + $0x54] sm:$0xf]
      %v379 = vld [vmem:[%s352 + $0x58] sm:$0xf]
      %v380 = vld [vmem:[%s352 + $0x5c] sm:$0xf]
      %v381 = vld [vmem:[%s352 + $0x60] sm:$0xf]
      %v382 = vld [vmem:[%s352 + $0x64] sm:$0xf]
      %v383 = vld [vmem:[%s352 + $0x68] sm:$0xf]
      %v384 = vld [vmem:[%s352 + $0x6c] sm:$0xf]
      %v385 = vld [vmem:[%s352 + $0x70] sm:$0xf]
      %v386 = vld [vmem:[%s352 + $0x74] sm:$0xf]
      %v387 = vld [vmem:[%s352 + $0x78] sm:$0xf]
      %v388 = vld [vmem:[%s352 + $0x7c] sm:$0xf]
      %v389 = vld [vmem:[%s352 + $0x80] sm:$0xf]
      %v390 = vld [vmem:[%s352 + $0x84] sm:$0xf]
      %v391 = vld [vmem:[%s352 + $0x88] sm:$0xf]
      %v392 = vld [vmem:[%s352 + $0x8c] sm:$0xf]
      %v393 = vld [vmem:[%s1] sm:$0x3]
      %v394 = vld [vmem:[%s352 + $0x90] sm:$0x1]
      %s395 = scalar_lea.vmem %s1, 2
      %v396 = vld [vmem:[%s395] sm:$0x3]
      %v434 = vunpack.c.l.b16 %v357
      %v435 = vunpack.c.l.b16 %v358
      %v436 = vunpack.c.l.b16 %v359
      %v437 = vunpack.c.l.b16 %v360
      %v438 = vunpack.c.l.b16 %v361
      %v439 = vunpack.c.l.b16 %v362
      %v440 = vunpack.c.l.b16 %v363
      %v441 = vunpack.c.l.b16 %v364
      %v442 = vunpack.c.l.b16 %v365
      %v443 = vunpack.c.l.b16 %v366
      %v444 = vunpack.c.l.b16 %v367
      %v445 = vunpack.c.l.b16 %v368
      %v446 = vunpack.c.l.b16 %v369
      %v447 = vunpack.c.l.b16 %v370
      %v448 = vunpack.c.l.b16 %v371
      %v449 = vunpack.c.l.b16 %v372
      %v450 = vunpack.c.l.b16 %v373
      %v451 = vunpack.c.l.b16 %v374
      %v452 = vunpack.c.l.b16 %v375
      %v453 = vunpack.c.l.b16 %v376
      %v454 = vunpack.c.l.b16 %v377
      %v455 = vunpack.c.l.b16 %v378
      %v456 = vunpack.c.l.b16 %v379
      %v457 = vunpack.c.l.b16 %v380
      %v458 = vunpack.c.l.b16 %v381
      %v459 = vunpack.c.l.b16 %v382
      %v460 = vunpack.c.l.b16 %v383
      %v461 = vunpack.c.l.b16 %v384
      %v462 = vunpack.c.l.b16 %v385
      %v463 = vunpack.c.l.b16 %v386
      %v464 = vunpack.c.l.b16 %v387
      %v465 = vunpack.c.l.b16 %v388
      %v466 = vunpack.c.l.b16 %v389
      %v467 = vunpack.c.l.b16 %v390
      %v468 = vunpack.c.l.b16 %v391
      %v469 = vunpack.c.l.b16 %v392
      %v470 = vunpack.c.l.b16 %v394
      %v471 = vpack.c.b16 %v435, %v434
      %v472 = vpack.c.b16 %v437, %v436
      %v473 = vpack.c.b16 %v439, %v438
      %v474 = vpack.c.b16 %v441, %v440
      %v475 = vpack.c.b16 %v443, %v442
      %v476 = vpack.c.b16 %v445, %v444
      %v477 = vpack.c.b16 %v447, %v446
      %v478 = vpack.c.b16 %v449, %v448
      %v479 = vpack.c.b16 %v451, %v450
      %v480 = vpack.c.b16 %v453, %v452
      %v481 = vpack.c.b16 %v455, %v454
      %v482 = vpack.c.b16 %v457, %v456
      %v483 = vpack.c.b16 %v459, %v458
      %v484 = vpack.c.b16 %v461, %v460
      %v485 = vpack.c.b16 %v463, %v462
      %v486 = vpack.c.b16 %v465, %v464
      %v487 = vpack.c.b16 %v467, %v466
      %v488 = vpack.c.b16 %v469, %v468
      %v489 = vpack.c.b16 %v470, %v470
      %vm490 = vsmask.f32 7424
      %v492 = vshrl.u32 %v471, 16
      %v494 = vshll.u32 %v471, 16
      %v496 = vrot.slane %v494, 1
      %v497 = vor.u32 %v492, %v496
      %v499 = vshll.u32 %v472, 16
      %v501 = vrot.slane %v499, 1
      %v502 = vsel %vm490, %v497, %v501
      %v503 = vshrl.u32 %v472, 16
      %v505 = vor.u32 %v503, %v501
      %v507 = vshll.u32 %v473, 16
      %v509 = vrot.slane %v507, 1
      %v510 = vsel %vm490, %v505, %v509
      %v511 = vshrl.u32 %v473, 16
      %v513 = vor.u32 %v511, %v509
      %v515 = vshll.u32 %v474, 16
      %v517 = vrot.slane %v515, 1
      %v518 = vsel %vm490, %v513, %v517
      %v519 = vshrl.u32 %v474, 16
      %v521 = vor.u32 %v519, %v517
      %v523 = vshll.u32 %v475, 16
      %v525 = vrot.slane %v523, 1
      %v526 = vsel %vm490, %v521, %v525
      %v527 = vshrl.u32 %v475, 16
      %v529 = vor.u32 %v527, %v525
      %v531 = vshll.u32 %v476, 16
      %v533 = vrot.slane %v531, 1
      %v534 = vsel %vm490, %v529, %v533
      %v535 = vshrl.u32 %v476, 16
      %v537 = vor.u32 %v535, %v533
      %v539 = vshll.u32 %v477, 16
      %v541 = vrot.slane %v539, 1
      %v542 = vsel %vm490, %v537, %v541
      %v543 = vshrl.u32 %v477, 16
      %v545 = vor.u32 %v543, %v541
      %v547 = vshll.u32 %v478, 16
      %v549 = vrot.slane %v547, 1
      %v550 = vsel %vm490, %v545, %v549
      %v551 = vshrl.u32 %v478, 16
      %v553 = vor.u32 %v551, %v549
      %v555 = vshll.u32 %v479, 16
      %v557 = vrot.slane %v555, 1
      %v558 = vsel %vm490, %v553, %v557
      %v559 = vshrl.u32 %v479, 16
      %v561 = vor.u32 %v559, %v557
      %v563 = vshll.u32 %v480, 16
      %v565 = vrot.slane %v563, 1
      %v566 = vsel %vm490, %v561, %v565
      %v567 = vshrl.u32 %v480, 16
      %v569 = vor.u32 %v567, %v565
      %v571 = vshll.u32 %v481, 16
      %v573 = vrot.slane %v571, 1
      %v574 = vsel %vm490, %v569, %v573
      %v575 = vshrl.u32 %v481, 16
      %v577 = vor.u32 %v575, %v573
      %v579 = vshll.u32 %v482, 16
      %v581 = vrot.slane %v579, 1
      %v582 = vsel %vm490, %v577, %v581
      %v583 = vshrl.u32 %v482, 16
      %v585 = vor.u32 %v583, %v581
      %v587 = vshll.u32 %v483, 16
      %v589 = vrot.slane %v587, 1
      %v590 = vsel %vm490, %v585, %v589
      %v591 = vshrl.u32 %v483, 16
      %v593 = vor.u32 %v591, %v589
      %v595 = vshll.u32 %v484, 16
      %v597 = vrot.slane %v595, 1
      %v598 = vsel %vm490, %v593, %v597
      %v599 = vshrl.u32 %v484, 16
      %v601 = vor.u32 %v599, %v597
      %v603 = vshll.u32 %v485, 16
      %v605 = vrot.slane %v603, 1
      %v606 = vsel %vm490, %v601, %v605
      %v607 = vshrl.u32 %v485, 16
      %v609 = vor.u32 %v607, %v605
      %v611 = vshll.u32 %v486, 16
      %v613 = vrot.slane %v611, 1
      %v614 = vsel %vm490, %v609, %v613
      %v615 = vshrl.u32 %v486, 16
      %v617 = vor.u32 %v615, %v613
      %v619 = vshll.u32 %v487, 16
      %v621 = vrot.slane %v619, 1
      %v622 = vsel %vm490, %v617, %v621
      %v623 = vshrl.u32 %v487, 16
      %v625 = vor.u32 %v623, %v621
      %v627 = vshll.u32 %v488, 16
      %v629 = vrot.slane %v627, 1
      %v630 = vsel %vm490, %v625, %v629
      %v631 = vshrl.u32 %v488, 16
      %v633 = vor.u32 %v631, %v629
      %v635 = vshll.u32 %v489, 16
      %v637 = vrot.slane %v635, 1
      %v638 = vsel %vm490, %v633, %v637
      %vm639 = vcmask 31744
      %v641 = vsel %vm639, %v502, 0
      %v644 = vsel %vm639, %v510, 0
      %v647 = vsel %vm639, %v518, 0
      %v650 = vsel %vm639, %v526, 0
      %v653 = vsel %vm639, %v534, 0
      %v656 = vsel %vm639, %v542, 0
      %v659 = vsel %vm639, %v550, 0
      %v662 = vsel %vm639, %v558, 0
      %v665 = vsel %vm639, %v566, 0
      %v668 = vsel %vm639, %v574, 0
      %v671 = vsel %vm639, %v582, 0
      %v674 = vsel %vm639, %v590, 0
      %v677 = vsel %vm639, %v598, 0
      %v680 = vsel %vm639, %v606, 0
      %v683 = vsel %vm639, %v614, 0
      %v686 = vsel %vm639, %v622, 0
      %v689 = vsel %vm639, %v630, 0
      %v692 = vsel %vm639, %v638, 0
      %vm694 = vcmask 1041408
      %v696 = vsel %vm694, %v396, 0
      %698 = vmatpush.bf16.msra.mxu0 0
      %699 = vmatpush.bf16.msra.mxu0 0
      %700 = vmatpush.bf16.msra.mxu0 0
      %701 = vmatpush.bf16.msra.mxu0 0
      %702 = vmatpush.bf16.msra.mxu0 0
      %703 = vmatpush.bf16.msra.mxu0 0
      %704 = vmatpush.bf16.msra.mxu0 0
      %705 = vmatpush.bf16.msra.mxu0 %v696
      %706 = vmatmul.bf16.gmra.mxu0 %v641
      %v707 = vpop.f32.mrf.mxu0
      %v708 = vadd.f32 0.0, %v707
      %v709 = vpop.f32.mrf.mxu0
      %v710 = vadd.f32 0.0, %v709
      %711 = vmatmul.bf16.gmra.mxu0 %v644
      %v712 = vpop.f32.mrf.mxu0
      %v713 = vadd.f32 0.0, %v712
      %v714 = vpop.f32.mrf.mxu0
      %v715 = vadd.f32 0.0, %v714
      %716 = vmatmul.bf16.gmra.mxu0 %v647
      %v717 = vpop.f32.mrf.mxu0
      %v718 = vadd.f32 0.0, %v717
      %v719 = vpop.f32.mrf.mxu0
      %v720 = vadd.f32 0.0, %v719
      %721 = vmatmul.bf16.gmra.mxu0 %v650
      %v722 = vpop.f32.mrf.mxu0
      %v723 = vadd.f32 0.0, %v722
      %v724 = vpop.f32.mrf.mxu0
      %v725 = vadd.f32 0.0, %v724
      %726 = vmatmul.bf16.gmra.mxu0 %v653
      %v727 = vpop.f32.mrf.mxu0
      %v728 = vadd.f32 0.0, %v727
      %v729 = vpop.f32.mrf.mxu0
      %v730 = vadd.f32 0.0, %v729
      %731 = vmatmul.bf16.gmra.mxu0 %v656
      %v732 = vpop.f32.mrf.mxu0
      %v733 = vadd.f32 0.0, %v732
      %v734 = vpop.f32.mrf.mxu0
      %v735 = vadd.f32 0.0, %v734
      %736 = vmatmul.bf16.gmra.mxu0 %v659
      %v737 = vpop.f32.mrf.mxu0
      %v738 = vadd.f32 0.0, %v737
      %v739 = vpop.f32.mrf.mxu0
      %v740 = vadd.f32 0.0, %v739
      %741 = vmatmul.bf16.gmra.mxu0 %v662
      %v742 = vpop.f32.mrf.mxu0
      %v743 = vadd.f32 0.0, %v742
      %v744 = vpop.f32.mrf.mxu0
      %v745 = vadd.f32 0.0, %v744
      %746 = vmatmul.bf16.gmra.mxu0 %v665
      %v747 = vpop.f32.mrf.mxu0
      %v748 = vadd.f32 0.0, %v747
      %v749 = vpop.f32.mrf.mxu0
      %v750 = vadd.f32 0.0, %v749
      %751 = vmatmul.bf16.gmra.mxu0 %v668
      %v752 = vpop.f32.mrf.mxu0
      %v753 = vadd.f32 0.0, %v752
      %v754 = vpop.f32.mrf.mxu0
      %v755 = vadd.f32 0.0, %v754
      %756 = vmatmul.bf16.gmra.mxu0 %v671
      %v757 = vpop.f32.mrf.mxu0
      %v758 = vadd.f32 0.0, %v757
      %v759 = vpop.f32.mrf.mxu0
      %v760 = vadd.f32 0.0, %v759
      %761 = vmatmul.bf16.gmra.mxu0 %v674
      %v762 = vpop.f32.mrf.mxu0
      %v763 = vadd.f32 0.0, %v762
      %v764 = vpop.f32.mrf.mxu0
      %v765 = vadd.f32 0.0, %v764
      %766 = vmatmul.bf16.gmra.mxu0 %v677
      %v767 = vpop.f32.mrf.mxu0
      %v768 = vadd.f32 0.0, %v767
      %v769 = vpop.f32.mrf.mxu0
      %v770 = vadd.f32 0.0, %v769
      %771 = vmatmul.bf16.gmra.mxu0 %v680
      %v772 = vpop.f32.mrf.mxu0
      %v773 = vadd.f32 0.0, %v772
      %v774 = vpop.f32.mrf.mxu0
      %v775 = vadd.f32 0.0, %v774
      %776 = vmatmul.bf16.gmra.mxu0 %v683
      %v777 = vpop.f32.mrf.mxu0
      %v778 = vadd.f32 0.0, %v777
      %v779 = vpop.f32.mrf.mxu0
      %v780 = vadd.f32 0.0, %v779
      %781 = vmatmul.bf16.gmra.mxu0 %v686
      %v782 = vpop.f32.mrf.mxu0
      %v783 = vadd.f32 0.0, %v782
      %v784 = vpop.f32.mrf.mxu0
      %v785 = vadd.f32 0.0, %v784
      %786 = vmatmul.bf16.gmra.mxu0 %v689
      %v787 = vpop.f32.mrf.mxu0
      %v788 = vadd.f32 0.0, %v787
      %v789 = vpop.f32.mrf.mxu0
      %v790 = vadd.f32 0.0, %v789
      %791 = vmatmul.bf16.gmra.mxu0 %v692
      %v792 = vpop.f32.mrf.mxu0
      %v793 = vadd.f32 0.0, %v792
      %v794 = vpop.f32.mrf.mxu0
      %v795 = vadd.f32 0.0, %v794
      %796 = vdwg.mxu0
      %v797 = vsel %vm639, %v471, 0
      %v799 = vsel %vm639, %v472, 0
      %v801 = vsel %vm639, %v473, 0
      %v803 = vsel %vm639, %v474, 0
      %v805 = vsel %vm639, %v475, 0
      %v807 = vsel %vm639, %v476, 0
      %v809 = vsel %vm639, %v477, 0
      %v811 = vsel %vm639, %v478, 0
      %v813 = vsel %vm639, %v479, 0
      %v815 = vsel %vm639, %v480, 0
      %v817 = vsel %vm639, %v481, 0
      %v819 = vsel %vm639, %v482, 0
      %v821 = vsel %vm639, %v483, 0
      %v823 = vsel %vm639, %v484, 0
      %v825 = vsel %vm639, %v485, 0
      %v827 = vsel %vm639, %v486, 0
      %v829 = vsel %vm639, %v487, 0
      %v831 = vsel %vm639, %v488, 0
      %v834 = vsel %vm694, %v393, 0
      %836 = vmatpush.bf16.msra.mxu0 0
      %837 = vmatpush.bf16.msra.mxu0 0
      %838 = vmatpush.bf16.msra.mxu0 0
      %839 = vmatpush.bf16.msra.mxu0 0
      %840 = vmatpush.bf16.msra.mxu0 0
      %841 = vmatpush.bf16.msra.mxu0 0
      %842 = vmatpush.bf16.msra.mxu0 0
      %843 = vmatpush.bf16.msra.mxu0 %v834
      %844 = vmatmul.bf16.gmra.mxu0 %v797
      %v845 = vpop.f32.mrf.mxu0
      %v846 = vadd.f32 %v708, %v845
      %v847 = vpop.f32.mrf.mxu0
      %v848 = vadd.f32 %v710, %v847
      %849 = vmatmul.bf16.gmra.mxu0 %v799
      %v850 = vpop.f32.mrf.mxu0
      %v851 = vadd.f32 %v713, %v850
      %v852 = vpop.f32.mrf.mxu0
      %v853 = vadd.f32 %v715, %v852
      %854 = vmatmul.bf16.gmra.mxu0 %v801
      %v855 = vpop.f32.mrf.mxu0
      %v856 = vadd.f32 %v718, %v855
      %v857 = vpop.f32.mrf.mxu0
      %v858 = vadd.f32 %v720, %v857
      %859 = vmatmul.bf16.gmra.mxu0 %v803
      %v860 = vpop.f32.mrf.mxu0
      %v861 = vadd.f32 %v723, %v860
      %v862 = vpop.f32.mrf.mxu0
      %v863 = vadd.f32 %v725, %v862
      %864 = vmatmul.bf16.gmra.mxu0 %v805
      %v865 = vpop.f32.mrf.mxu0
      %v866 = vadd.f32 %v728, %v865
      %v867 = vpop.f32.mrf.mxu0
      %v868 = vadd.f32 %v730, %v867
      %869 = vmatmul.bf16.gmra.mxu0 %v807
      %v870 = vpop.f32.mrf.mxu0
      %v871 = vadd.f32 %v733, %v870
      %v872 = vpop.f32.mrf.mxu0
      %v873 = vadd.f32 %v735, %v872
      %874 = vmatmul.bf16.gmra.mxu0 %v809
      %v875 = vpop.f32.mrf.mxu0
      %v876 = vadd.f32 %v738, %v875
      %v877 = vpop.f32.mrf.mxu0
      %v878 = vadd.f32 %v740, %v877
      %879 = vmatmul.bf16.gmra.mxu0 %v811
      %v880 = vpop.f32.mrf.mxu0
      %v881 = vadd.f32 %v743, %v880
      %v882 = vpop.f32.mrf.mxu0
      %v883 = vadd.f32 %v745, %v882
      %884 = vmatmul.bf16.gmra.mxu0 %v813
      %v885 = vpop.f32.mrf.mxu0
      %v886 = vadd.f32 %v748, %v885
      %v887 = vpop.f32.mrf.mxu0
      %v888 = vadd.f32 %v750, %v887
      %889 = vmatmul.bf16.gmra.mxu0 %v815
      %v890 = vpop.f32.mrf.mxu0
      %v891 = vadd.f32 %v753, %v890
      %v892 = vpop.f32.mrf.mxu0
      %v893 = vadd.f32 %v755, %v892
      %894 = vmatmul.bf16.gmra.mxu0 %v817
      %v895 = vpop.f32.mrf.mxu0
      %v896 = vadd.f32 %v758, %v895
      %v897 = vpop.f32.mrf.mxu0
      %v898 = vadd.f32 %v760, %v897
      %899 = vmatmul.bf16.gmra.mxu0 %v819
      %v900 = vpop.f32.mrf.mxu0
      %v901 = vadd.f32 %v763, %v900
      %v902 = vpop.f32.mrf.mxu0
      %v903 = vadd.f32 %v765, %v902
      %904 = vmatmul.bf16.gmra.mxu0 %v821
      %v905 = vpop.f32.mrf.mxu0
      %v906 = vadd.f32 %v768, %v905
      %v907 = vpop.f32.mrf.mxu0
      %v908 = vadd.f32 %v770, %v907
      %909 = vmatmul.bf16.gmra.mxu0 %v823
      %v910 = vpop.f32.mrf.mxu0
      %v911 = vadd.f32 %v773, %v910
      %v912 = vpop.f32.mrf.mxu0
      %v913 = vadd.f32 %v775, %v912
      %914 = vmatmul.bf16.gmra.mxu0 %v825
      %v915 = vpop.f32.mrf.mxu0
      %v916 = vadd.f32 %v778, %v915
      %v917 = vpop.f32.mrf.mxu0
      %v918 = vadd.f32 %v780, %v917
      %919 = vmatmul.bf16.gmra.mxu0 %v827
      %v920 = vpop.f32.mrf.mxu0
      %v921 = vadd.f32 %v783, %v920
      %v922 = vpop.f32.mrf.mxu0
      %v923 = vadd.f32 %v785, %v922
      %924 = vmatmul.bf16.gmra.mxu0 %v829
      %v925 = vpop.f32.mrf.mxu0
      %v926 = vadd.f32 %v788, %v925
      %v927 = vpop.f32.mrf.mxu0
      %v928 = vadd.f32 %v790, %v927
      %929 = vmatmul.bf16.gmra.mxu0 %v831
      %v930 = vpop.f32.mrf.mxu0
      %v931 = vadd.f32 %v793, %v930
      %v932 = vpop.f32.mrf.mxu0
      %v933 = vadd.f32 %v795, %v932
      %934 = vdwg.mxu0
      %v935 = vld [vmem:[%s352] sm:$0xe]
      %s936 = scalar_lea.vmem %s1, 4
      %v937 = vld [vmem:[%s936] sm:$0x3]
      %v939 = vunpack.c.l.b16 %v935
      %v940 = vpack.c.b16 %v435, %v939
      %vm941 = vcmask 1046528
      %v942 = vrot.slane %v940, 1
      %v943 = vrot.slane %v472, 1
      %v944 = vsel %vm941, %v942, %v943
      %v945 = vrot.slane %v473, 1
      %v946 = vsel %vm941, %v943, %v945
      %v947 = vrot.slane %v474, 1
      %v948 = vsel %vm941, %v945, %v947
      %v949 = vrot.slane %v475, 1
      %v950 = vsel %vm941, %v947, %v949
      %v951 = vrot.slane %v476, 1
      %v952 = vsel %vm941, %v949, %v951
      %v953 = vrot.slane %v477, 1
      %v954 = vsel %vm941, %v951, %v953
      %v955 = vrot.slane %v478, 1
      %v956 = vsel %vm941, %v953, %v955
      %v957 = vrot.slane %v479, 1
      %v958 = vsel %vm941, %v955, %v957
      %v959 = vrot.slane %v480, 1
      %v960 = vsel %vm941, %v957, %v959
      %v961 = vrot.slane %v481, 1
      %v962 = vsel %vm941, %v959, %v961
      %v963 = vrot.slane %v482, 1
      %v964 = vsel %vm941, %v961, %v963
      %v965 = vrot.slane %v483, 1
      %v966 = vsel %vm941, %v963, %v965
      %v967 = vrot.slane %v484, 1
      %v968 = vsel %vm941, %v965, %v967
      %v969 = vrot.slane %v485, 1
      %v970 = vsel %vm941, %v967, %v969
      %v971 = vrot.slane %v486, 1
      %v972 = vsel %vm941, %v969, %v971
      %v973 = vrot.slane %v487, 1
      %v974 = vsel %vm941, %v971, %v973
      %v975 = vrot.slane %v488, 1
      %v976 = vsel %vm941, %v973, %v975
      %v977 = vrot.slane %v489, 1
      %v978 = vsel %vm941, %v975, %v977
      %v980 = vsel %vm639, %v944, 0
      %v983 = vsel %vm639, %v946, 0
      %v986 = vsel %vm639, %v948, 0
      %v989 = vsel %vm639, %v950, 0
      %v992 = vsel %vm639, %v952, 0
      %v995 = vsel %vm639, %v954, 0
      %v998 = vsel %vm639, %v956, 0
      %v1001 = vsel %vm639, %v958, 0
      %v1004 = vsel %vm639, %v960, 0
      %v1007 = vsel %vm639, %v962, 0
      %v1010 = vsel %vm639, %v964, 0
      %v1013 = vsel %vm639, %v966, 0
      %v1016 = vsel %vm639, %v968, 0
      %v1019 = vsel %vm639, %v970, 0
      %v1022 = vsel %vm639, %v972, 0
      %v1025 = vsel %vm639, %v974, 0
      %v1028 = vsel %vm639, %v976, 0
      %v1031 = vsel %vm639, %v978, 0
      %v1034 = vsel %vm694, %v937, 0
      %1036 = vmatpush.bf16.msra.mxu0 0
      %1037 = vmatpush.bf16.msra.mxu0 0
      %1038 = vmatpush.bf16.msra.mxu0 0
      %1039 = vmatpush.bf16.msra.mxu0 0
      %1040 = vmatpush.bf16.msra.mxu0 0
      %1041 = vmatpush.bf16.msra.mxu0 0
      %1042 = vmatpush.bf16.msra.mxu0 0
      %1043 = vmatpush.bf16.msra.mxu0 %v1034
      %1044 = vmatmul.bf16.gmra.mxu0 %v980
      %v1045 = vpop.f32.mrf.mxu0
      %v1046 = vadd.f32 0.0, %v1045
      %v1047 = vpop.f32.mrf.mxu0
      %v1048 = vadd.f32 0.0, %v1047
      %1049 = vmatmul.bf16.gmra.mxu0 %v983
      %v1050 = vpop.f32.mrf.mxu0
      %v1051 = vadd.f32 0.0, %v1050
      %v1052 = vpop.f32.mrf.mxu0
      %v1053 = vadd.f32 0.0, %v1052
      %1054 = vmatmul.bf16.gmra.mxu0 %v986
      %v1055 = vpop.f32.mrf.mxu0
      %v1056 = vadd.f32 0.0, %v1055
      %v1057 = vpop.f32.mrf.mxu0
      %v1058 = vadd.f32 0.0, %v1057
      %1059 = vmatmul.bf16.gmra.mxu0 %v989
      %v1060 = vpop.f32.mrf.mxu0
      %v1061 = vadd.f32 0.0, %v1060
      %v1062 = vpop.f32.mrf.mxu0
      %v1063 = vadd.f32 0.0, %v1062
      %1064 = vmatmul.bf16.gmra.mxu0 %v992
      %v1065 = vpop.f32.mrf.mxu0
      %v1066 = vadd.f32 0.0, %v1065
      %v1067 = vpop.f32.mrf.mxu0
      %v1068 = vadd.f32 0.0, %v1067
      %1069 = vmatmul.bf16.gmra.mxu0 %v995
      %v1070 = vpop.f32.mrf.mxu0
      %v1071 = vadd.f32 0.0, %v1070
      %v1072 = vpop.f32.mrf.mxu0
      %v1073 = vadd.f32 0.0, %v1072
      %1074 = vmatmul.bf16.gmra.mxu0 %v998
      %v1075 = vpop.f32.mrf.mxu0
      %v1076 = vadd.f32 0.0, %v1075
      %v1077 = vpop.f32.mrf.mxu0
      %v1078 = vadd.f32 0.0, %v1077
      %1079 = vmatmul.bf16.gmra.mxu0 %v1001
      %v1080 = vpop.f32.mrf.mxu0
      %v1081 = vadd.f32 0.0, %v1080
      %v1082 = vpop.f32.mrf.mxu0
      %v1083 = vadd.f32 0.0, %v1082
      %1084 = vmatmul.bf16.gmra.mxu0 %v1004
      %v1085 = vpop.f32.mrf.mxu0
      %v1086 = vadd.f32 0.0, %v1085
      %v1087 = vpop.f32.mrf.mxu0
      %v1088 = vadd.f32 0.0, %v1087
      %1089 = vmatmul.bf16.gmra.mxu0 %v1007
      %v1090 = vpop.f32.mrf.mxu0
      %v1091 = vadd.f32 0.0, %v1090
      %v1092 = vpop.f32.mrf.mxu0
      %v1093 = vadd.f32 0.0, %v1092
      %1094 = vmatmul.bf16.gmra.mxu0 %v1010
      %v1095 = vpop.f32.mrf.mxu0
      %v1096 = vadd.f32 0.0, %v1095
      %v1097 = vpop.f32.mrf.mxu0
      %v1098 = vadd.f32 0.0, %v1097
      %1099 = vmatmul.bf16.gmra.mxu0 %v1013
      %v1100 = vpop.f32.mrf.mxu0
      %v1101 = vadd.f32 0.0, %v1100
      %v1102 = vpop.f32.mrf.mxu0
      %v1103 = vadd.f32 0.0, %v1102
      %1104 = vmatmul.bf16.gmra.mxu0 %v1016
      %v1105 = vpop.f32.mrf.mxu0
      %v1106 = vadd.f32 0.0, %v1105
      %v1107 = vpop.f32.mrf.mxu0
      %v1108 = vadd.f32 0.0, %v1107
      %1109 = vmatmul.bf16.gmra.mxu0 %v1019
      %v1110 = vpop.f32.mrf.mxu0
      %v1111 = vadd.f32 0.0, %v1110
      %v1112 = vpop.f32.mrf.mxu0
      %v1113 = vadd.f32 0.0, %v1112
      %1114 = vmatmul.bf16.gmra.mxu0 %v1022
      %v1115 = vpop.f32.mrf.mxu0
      %v1116 = vadd.f32 0.0, %v1115
      %v1117 = vpop.f32.mrf.mxu0
      %v1118 = vadd.f32 0.0, %v1117
      %1119 = vmatmul.bf16.gmra.mxu0 %v1025
      %v1120 = vpop.f32.mrf.mxu0
      %v1121 = vadd.f32 0.0, %v1120
      %v1122 = vpop.f32.mrf.mxu0
      %v1123 = vadd.f32 0.0, %v1122
      %1124 = vmatmul.bf16.gmra.mxu0 %v1028
      %v1125 = vpop.f32.mrf.mxu0
      %v1126 = vadd.f32 0.0, %v1125
      %v1127 = vpop.f32.mrf.mxu0
      %v1128 = vadd.f32 0.0, %v1127
      %1129 = vmatmul.bf16.gmra.mxu0 %v1031
      %v1130 = vpop.f32.mrf.mxu0
      %v1131 = vadd.f32 0.0, %v1130
      %v1132 = vpop.f32.mrf.mxu0
      %v1133 = vadd.f32 0.0, %v1132
      %1134 = vdwg.mxu0
      %v1135 = vadd.f32 %v846, %v1046
      %v1136 = vadd.f32 %v848, %v1048
      %v1137 = vadd.f32 %v851, %v1051
      %v1138 = vadd.f32 %v853, %v1053
      %v1139 = vadd.f32 %v856, %v1056
      %v1140 = vadd.f32 %v858, %v1058
      %v1141 = vadd.f32 %v861, %v1061
      %v1142 = vadd.f32 %v863, %v1063
      %v1143 = vadd.f32 %v866, %v1066
      %v1144 = vadd.f32 %v868, %v1068
      %v1145 = vadd.f32 %v871, %v1071
      %v1146 = vadd.f32 %v873, %v1073
      %v1147 = vadd.f32 %v876, %v1076
      %v1148 = vadd.f32 %v878, %v1078
      %v1149 = vadd.f32 %v881, %v1081
      %v1150 = vadd.f32 %v883, %v1083
      %v1151 = vadd.f32 %v886, %v1086
      %v1152 = vadd.f32 %v888, %v1088
      %v1153 = vadd.f32 %v891, %v1091
      %v1154 = vadd.f32 %v893, %v1093
      %v1155 = vadd.f32 %v896, %v1096
      %v1156 = vadd.f32 %v898, %v1098
      %v1157 = vadd.f32 %v901, %v1101
      %v1158 = vadd.f32 %v903, %v1103
      %v1159 = vadd.f32 %v906, %v1106
      %v1160 = vadd.f32 %v908, %v1108
      %v1161 = vadd.f32 %v911, %v1111
      %v1162 = vadd.f32 %v913, %v1113
      %v1163 = vadd.f32 %v916, %v1116
      %v1164 = vadd.f32 %v918, %v1118
      %v1165 = vadd.f32 %v921, %v1121
      %v1166 = vadd.f32 %v923, %v1123
      %v1167 = vadd.f32 %v926, %v1126
      %v1168 = vadd.f32 %v928, %v1128
      %v1169 = vadd.f32 %v931, %v1131
      %v1170 = vadd.f32 %v933, %v1133
      %v1171 = vld [vmem:[%s352 + $0x8] sm:$0xe]
      %v1172 = vld [vmem:[%s352 + $0xc] sm:$0xf]
      %v1173 = vld [vmem:[%s352 + $0x10] sm:$0xf]
      %v1174 = vld [vmem:[%s352 + $0x14] sm:$0xf]
      %v1175 = vld [vmem:[%s352 + $0x18] sm:$0xf]
      %v1176 = vld [vmem:[%s352 + $0x1c] sm:$0xf]
      %v1177 = vld [vmem:[%s352 + $0x20] sm:$0xf]
      %v1178 = vld [vmem:[%s352 + $0x24] sm:$0xf]
      %v1179 = vld [vmem:[%s352 + $0x28] sm:$0xf]
      %v1180 = vld [vmem:[%s352 + $0x2c] sm:$0xf]
      %v1181 = vld [vmem:[%s352 + $0x30] sm:$0xf]
      %v1182 = vld [vmem:[%s352 + $0x34] sm:$0xf]
      %v1183 = vld [vmem:[%s352 + $0x38] sm:$0xf]
      %v1184 = vld [vmem:[%s352 + $0x3c] sm:$0xf]
      %v1185 = vld [vmem:[%s352 + $0x40] sm:$0xf]
      %v1186 = vld [vmem:[%s352 + $0x44] sm:$0xf]
      %v1187 = vld [vmem:[%s352 + $0x48] sm:$0xf]
      %v1188 = vld [vmem:[%s352 + $0x4c] sm:$0xf]
      %v1189 = vld [vmem:[%s352 + $0x50] sm:$0xf]
      %v1190 = vld [vmem:[%s352 + $0x54] sm:$0xf]
      %v1191 = vld [vmem:[%s352 + $0x58] sm:$0xf]
      %v1192 = vld [vmem:[%s352 + $0x5c] sm:$0xf]
      %v1193 = vld [vmem:[%s352 + $0x60] sm:$0xf]
      %v1194 = vld [vmem:[%s352 + $0x64] sm:$0xf]
      %v1195 = vld [vmem:[%s352 + $0x68] sm:$0xf]
      %v1196 = vld [vmem:[%s352 + $0x6c] sm:$0xf]
      %v1197 = vld [vmem:[%s352 + $0x70] sm:$0xf]
      %v1198 = vld [vmem:[%s352 + $0x74] sm:$0xf]
      %v1199 = vld [vmem:[%s352 + $0x78] sm:$0xf]
      %v1200 = vld [vmem:[%s352 + $0x7c] sm:$0xf]
      %v1201 = vld [vmem:[%s352 + $0x80] sm:$0xf]
      %v1202 = vld [vmem:[%s352 + $0x84] sm:$0xf]
      %v1203 = vld [vmem:[%s352 + $0x88] sm:$0xf]
      %v1204 = vld [vmem:[%s352 + $0x8c] sm:$0xf]
      %v1205 = vld [vmem:[%s352 + $0x90] sm:$0xf]
      %v1206 = vld [vmem:[%s352 + $0x94] sm:$0xf]
      %v1207 = vld [vmem:[%s352 + $0x98] sm:$0x1]
      %s1208 = scalar_lea.vmem %s1, 6
      %v1209 = vld [vmem:[%s1208] sm:$0x3]
      %v1247 = vunpack.c.l.b16 %v1171
      %v1248 = vunpack.c.l.b16 %v1172
      %v1249 = vunpack.c.l.b16 %v1173
      %v1250 = vunpack.c.l.b16 %v1174
      %v1251 = vunpack.c.l.b16 %v1175
      %v1252 = vunpack.c.l.b16 %v1176
      %v1253 = vunpack.c.l.b16 %v1177
      %v1254 = vunpack.c.l.b16 %v1178
      %v1255 = vunpack.c.l.b16 %v1179
      %v1256 = vunpack.c.l.b16 %v1180
      %v1257 = vunpack.c.l.b16 %v1181
      %v1258 = vunpack.c.l.b16 %v1182
      %v1259 = vunpack.c.l.b16 %v1183
      %v1260 = vunpack.c.l.b16 %v1184
      %v1261 = vunpack.c.l.b16 %v1185
      %v1262 = vunpack.c.l.b16 %v1186
      %v1263 = vunpack.c.l.b16 %v1187
      %v1264 = vunpack.c.l.b16 %v1188
      %v1265 = vunpack.c.l.b16 %v1189
      %v1266 = vunpack.c.l.b16 %v1190
      %v1267 = vunpack.c.l.b16 %v1191
      %v1268 = vunpack.c.l.b16 %v1192
      %v1269 = vunpack.c.l.b16 %v1193
      %v1270 = vunpack.c.l.b16 %v1194
      %v1271 = vunpack.c.l.b16 %v1195
      %v1272 = vunpack.c.l.b16 %v1196
      %v1273 = vunpack.c.l.b16 %v1197
      %v1274 = vunpack.c.l.b16 %v1198
      %v1275 = vunpack.c.l.b16 %v1199
      %v1276 = vunpack.c.l.b16 %v1200
      %v1277 = vunpack.c.l.b16 %v1201
      %v1278 = vunpack.c.l.b16 %v1202
      %v1279 = vunpack.c.l.b16 %v1203
      %v1280 = vunpack.c.l.b16 %v1204
      %v1281 = vunpack.c.l.b16 %v1205
      %v1282 = vunpack.c.l.b16 %v1206
      %v1283 = vunpack.c.l.b16 %v1207
      %v1284 = vpack.c.b16 %v1248, %v1247
      %v1285 = vpack.c.b16 %v1250, %v1249
      %v1286 = vpack.c.b16 %v1252, %v1251
      %v1287 = vpack.c.b16 %v1254, %v1253
      %v1288 = vpack.c.b16 %v1256, %v1255
      %v1289 = vpack.c.b16 %v1258, %v1257
      %v1290 = vpack.c.b16 %v1260, %v1259
      %v1291 = vpack.c.b16 %v1262, %v1261
      %v1292 = vpack.c.b16 %v1264, %v1263
      %v1293 = vpack.c.b16 %v1266, %v1265
      %v1294 = vpack.c.b16 %v1268, %v1267
      %v1295 = vpack.c.b16 %v1270, %v1269
      %v1296 = vpack.c.b16 %v1272, %v1271
      %v1297 = vpack.c.b16 %v1274, %v1273
      %v1298 = vpack.c.b16 %v1276, %v1275
      %v1299 = vpack.c.b16 %v1278, %v1277
      %v1300 = vpack.c.b16 %v1280, %v1279
      %v1301 = vpack.c.b16 %v1282, %v1281
      %v1302 = vpack.c.b16 %v1283, %v1283
      %v1303 = vrot.slane %v1284, 1
      %v1304 = vrot.slane %v1285, 1
      %v1305 = vsel %vm941, %v1303, %v1304
      %v1306 = vrot.slane %v1286, 1
      %v1307 = vsel %vm941, %v1304, %v1306
      %v1308 = vrot.slane %v1287, 1
      %v1309 = vsel %vm941, %v1306, %v1308
      %v1310 = vrot.slane %v1288, 1
      %v1311 = vsel %vm941, %v1308, %v1310
      %v1312 = vrot.slane %v1289, 1
      %v1313 = vsel %vm941, %v1310, %v1312
      %v1314 = vrot.slane %v1290, 1
      %v1315 = vsel %vm941, %v1312, %v1314
      %v1316 = vrot.slane %v1291, 1
      %v1317 = vsel %vm941, %v1314, %v1316
      %v1318 = vrot.slane %v1292, 1
      %v1319 = vsel %vm941, %v1316, %v1318
      %v1320 = vrot.slane %v1293, 1
      %v1321 = vsel %vm941, %v1318, %v1320
      %v1322 = vrot.slane %v1294, 1
      %v1323 = vsel %vm941, %v1320, %v1322
      %v1324 = vrot.slane %v1295, 1
      %v1325 = vsel %vm941, %v1322, %v1324
      %v1326 = vrot.slane %v1296, 1
      %v1327 = vsel %vm941, %v1324, %v1326
      %v1328 = vrot.slane %v1297, 1
      %v1329 = vsel %vm941, %v1326, %v1328
      %v1330 = vrot.slane %v1298, 1
      %v1331 = vsel %vm941, %v1328, %v1330
      %v1332 = vrot.slane %v1299, 1
      %v1333 = vsel %vm941, %v1330, %v1332
      %v1334 = vrot.slane %v1300, 1
      %v1335 = vsel %vm941, %v1332, %v1334
      %v1336 = vrot.slane %v1301, 1
      %v1337 = vsel %vm941, %v1334, %v1336
      %v1338 = vrot.slane %v1302, 1
      %v1339 = vsel %vm941, %v1336, %v1338
      %v1341 = vsel %vm639, %v1305, 0
      %v1344 = vsel %vm639, %v1307, 0
      %v1347 = vsel %vm639, %v1309, 0
      %v1350 = vsel %vm639, %v1311, 0
      %v1353 = vsel %vm639, %v1313, 0
      %v1356 = vsel %vm639, %v1315, 0
      %v1359 = vsel %vm639, %v1317, 0
      %v1362 = vsel %vm639, %v1319, 0
      %v1365 = vsel %vm639, %v1321, 0
      %v1368 = vsel %vm639, %v1323, 0
      %v1371 = vsel %vm639, %v1325, 0
      %v1374 = vsel %vm639, %v1327, 0
      %v1377 = vsel %vm639, %v1329, 0
      %v1380 = vsel %vm639, %v1331, 0
      %v1383 = vsel %vm639, %v1333, 0
      %v1386 = vsel %vm639, %v1335, 0
      %v1389 = vsel %vm639, %v1337, 0
      %v1392 = vsel %vm639, %v1339, 0
      %v1395 = vsel %vm694, %v1209, 0
      %1397 = vmatpush.bf16.msra.mxu0 0
      %1398 = vmatpush.bf16.msra.mxu0 0
      %1399 = vmatpush.bf16.msra.mxu0 0
      %1400 = vmatpush.bf16.msra.mxu0 0
      %1401 = vmatpush.bf16.msra.mxu0 0
      %1402 = vmatpush.bf16.msra.mxu0 0
      %1403 = vmatpush.bf16.msra.mxu0 0
      %1404 = vmatpush.bf16.msra.mxu0 %v1395
      %1405 = vmatmul.bf16.gmra.mxu0 %v1341
      %v1406 = vpop.f32.mrf.mxu0
      %v1407 = vadd.f32 0.0, %v1406
      %v1408 = vpop.f32.mrf.mxu0
      %v1409 = vadd.f32 0.0, %v1408
      %1410 = vmatmul.bf16.gmra.mxu0 %v1344
      %v1411 = vpop.f32.mrf.mxu0
      %v1412 = vadd.f32 0.0, %v1411
      %v1413 = vpop.f32.mrf.mxu0
      %v1414 = vadd.f32 0.0, %v1413
      %1415 = vmatmul.bf16.gmra.mxu0 %v1347
      %v1416 = vpop.f32.mrf.mxu0
      %v1417 = vadd.f32 0.0, %v1416
      %v1418 = vpop.f32.mrf.mxu0
      %v1419 = vadd.f32 0.0, %v1418
      %1420 = vmatmul.bf16.gmra.mxu0 %v1350
      %v1421 = vpop.f32.mrf.mxu0
      %v1422 = vadd.f32 0.0, %v1421
      %v1423 = vpop.f32.mrf.mxu0
      %v1424 = vadd.f32 0.0, %v1423
      %1425 = vmatmul.bf16.gmra.mxu0 %v1353
      %v1426 = vpop.f32.mrf.mxu0
      %v1427 = vadd.f32 0.0, %v1426
      %v1428 = vpop.f32.mrf.mxu0
      %v1429 = vadd.f32 0.0, %v1428
      %1430 = vmatmul.bf16.gmra.mxu0 %v1356
      %v1431 = vpop.f32.mrf.mxu0
      %v1432 = vadd.f32 0.0, %v1431
      %v1433 = vpop.f32.mrf.mxu0
      %v1434 = vadd.f32 0.0, %v1433
      %1435 = vmatmul.bf16.gmra.mxu0 %v1359
      %v1436 = vpop.f32.mrf.mxu0
      %v1437 = vadd.f32 0.0, %v1436
      %v1438 = vpop.f32.mrf.mxu0
      %v1439 = vadd.f32 0.0, %v1438
      %1440 = vmatmul.bf16.gmra.mxu0 %v1362
      %v1441 = vpop.f32.mrf.mxu0
      %v1442 = vadd.f32 0.0, %v1441
      %v1443 = vpop.f32.mrf.mxu0
      %v1444 = vadd.f32 0.0, %v1443
      %1445 = vmatmul.bf16.gmra.mxu0 %v1365
      %v1446 = vpop.f32.mrf.mxu0
      %v1447 = vadd.f32 0.0, %v1446
      %v1448 = vpop.f32.mrf.mxu0
      %v1449 = vadd.f32 0.0, %v1448
      %1450 = vmatmul.bf16.gmra.mxu0 %v1368
      %v1451 = vpop.f32.mrf.mxu0
      %v1452 = vadd.f32 0.0, %v1451
      %v1453 = vpop.f32.mrf.mxu0
      %v1454 = vadd.f32 0.0, %v1453
      %1455 = vmatmul.bf16.gmra.mxu0 %v1371
      %v1456 = vpop.f32.mrf.mxu0
      %v1457 = vadd.f32 0.0, %v1456
      %v1458 = vpop.f32.mrf.mxu0
      %v1459 = vadd.f32 0.0, %v1458
      %1460 = vmatmul.bf16.gmra.mxu0 %v1374
      %v1461 = vpop.f32.mrf.mxu0
      %v1462 = vadd.f32 0.0, %v1461
      %v1463 = vpop.f32.mrf.mxu0
      %v1464 = vadd.f32 0.0, %v1463
      %1465 = vmatmul.bf16.gmra.mxu0 %v1377
      %v1466 = vpop.f32.mrf.mxu0
      %v1467 = vadd.f32 0.0, %v1466
      %v1468 = vpop.f32.mrf.mxu0
      %v1469 = vadd.f32 0.0, %v1468
      %1470 = vmatmul.bf16.gmra.mxu0 %v1380
      %v1471 = vpop.f32.mrf.mxu0
      %v1472 = vadd.f32 0.0, %v1471
      %v1473 = vpop.f32.mrf.mxu0
      %v1474 = vadd.f32 0.0, %v1473
      %1475 = vmatmul.bf16.gmra.mxu0 %v1383
      %v1476 = vpop.f32.mrf.mxu0
      %v1477 = vadd.f32 0.0, %v1476
      %v1478 = vpop.f32.mrf.mxu0
      %v1479 = vadd.f32 0.0, %v1478
      %1480 = vmatmul.bf16.gmra.mxu0 %v1386
      %v1481 = vpop.f32.mrf.mxu0
      %v1482 = vadd.f32 0.0, %v1481
      %v1483 = vpop.f32.mrf.mxu0
      %v1484 = vadd.f32 0.0, %v1483
      %1485 = vmatmul.bf16.gmra.mxu0 %v1389
      %v1486 = vpop.f32.mrf.mxu0
      %v1487 = vadd.f32 0.0, %v1486
      %v1488 = vpop.f32.mrf.mxu0
      %v1489 = vadd.f32 0.0, %v1488
      %1490 = vmatmul.bf16.gmra.mxu0 %v1392
      %v1491 = vpop.f32.mrf.mxu0
      %v1492 = vadd.f32 0.0, %v1491
      %v1493 = vpop.f32.mrf.mxu0
      %v1494 = vadd.f32 0.0, %v1493
      %1495 = vdwg.mxu0
      %v1496 = vadd.f32 %v1135, %v1407
      %v1497 = vadd.f32 %v1136, %v1409
      %v1498 = vadd.f32 %v1137, %v1412
      %v1499 = vadd.f32 %v1138, %v1414
      %v1500 = vadd.f32 %v1139, %v1417
      %v1501 = vadd.f32 %v1140, %v1419
      %v1502 = vadd.f32 %v1141, %v1422
      %v1503 = vadd.f32 %v1142, %v1424
      %v1504 = vadd.f32 %v1143, %v1427
      %v1505 = vadd.f32 %v1144, %v1429
      %v1506 = vadd.f32 %v1145, %v1432
      %v1507 = vadd.f32 %v1146, %v1434
      %v1508 = vadd.f32 %v1147, %v1437
      %v1509 = vadd.f32 %v1148, %v1439
      %v1510 = vadd.f32 %v1149, %v1442
      %v1511 = vadd.f32 %v1150, %v1444
      %v1512 = vadd.f32 %v1151, %v1447
      %v1513 = vadd.f32 %v1152, %v1449
      %v1514 = vadd.f32 %v1153, %v1452
      %v1515 = vadd.f32 %v1154, %v1454
      %v1516 = vadd.f32 %v1155, %v1457
      %v1517 = vadd.f32 %v1156, %v1459
      %v1518 = vadd.f32 %v1157, %v1462
      %v1519 = vadd.f32 %v1158, %v1464
      %v1520 = vadd.f32 %v1159, %v1467
      %v1521 = vadd.f32 %v1160, %v1469
      %v1522 = vadd.f32 %v1161, %v1472
      %v1523 = vadd.f32 %v1162, %v1474
      %v1524 = vadd.f32 %v1163, %v1477
      %v1525 = vadd.f32 %v1164, %v1479
      %v1526 = vadd.f32 %v1165, %v1482
      %v1527 = vadd.f32 %v1166, %v1484
      %v1528 = vadd.f32 %v1167, %v1487
      %v1529 = vadd.f32 %v1168, %v1489
      %v1530 = vadd.f32 %v1169, %v1492
      %v1531 = vadd.f32 %v1170, %v1494
      %v1532 = vld [vmem:[%s352 + $0x98] sm:$0x3]
      %s1533 = scalar_lea.vmem %s1, 8
      %v1534 = vld [vmem:[%s1533] sm:$0x3]
      %v1536 = vunpack.c.l.b16 %v1532
      %v1537 = vpack.c.b16 %v1536, %v1536
      %vm1538 = vsmask.f32 6400
      %v1540 = vshrl.u32 %v1284, 16
      %v1542 = vrot.slane %v1540, 1
      %v1543 = vshll.u32 %v1284, 16
      %v1545 = vrot.slane %v1543, 2
      %v1546 = vor.u32 %v1542, %v1545
      %v1548 = vshrl.u32 %v1285, 16
      %v1550 = vrot.slane %v1548, 1
      %v1551 = vshll.u32 %v1285, 16
      %v1553 = vrot.slane %v1551, 2
      %v1554 = vor.u32 %v1550, %v1553
      %v1555 = vsel %vm1538, %v1546, %v1554
      %v1557 = vshrl.u32 %v1286, 16
      %v1559 = vrot.slane %v1557, 1
      %v1560 = vshll.u32 %v1286, 16
      %v1562 = vrot.slane %v1560, 2
      %v1563 = vor.u32 %v1559, %v1562
      %v1564 = vsel %vm1538, %v1554, %v1563
      %v1566 = vshrl.u32 %v1287, 16
      %v1568 = vrot.slane %v1566, 1
      %v1569 = vshll.u32 %v1287, 16
      %v1571 = vrot.slane %v1569, 2
      %v1572 = vor.u32 %v1568, %v1571
      %v1573 = vsel %vm1538, %v1563, %v1572
      %v1575 = vshrl.u32 %v1288, 16
      %v1577 = vrot.slane %v1575, 1
      %v1578 = vshll.u32 %v1288, 16
      %v1580 = vrot.slane %v1578, 2
      %v1581 = vor.u32 %v1577, %v1580
      %v1582 = vsel %vm1538, %v1572, %v1581
      %v1584 = vshrl.u32 %v1289, 16
      %v1586 = vrot.slane %v1584, 1
      %v1587 = vshll.u32 %v1289, 16
      %v1589 = vrot.slane %v1587, 2
      %v1590 = vor.u32 %v1586, %v1589
      %v1591 = vsel %vm1538, %v1581, %v1590
      %v1593 = vshrl.u32 %v1290, 16
      %v1595 = vrot.slane %v1593, 1
      %v1596 = vshll.u32 %v1290, 16
      %v1598 = vrot.slane %v1596, 2
      %v1599 = vor.u32 %v1595, %v1598
      %v1600 = vsel %vm1538, %v1590, %v1599
      %v1602 = vshrl.u32 %v1291, 16
      %v1604 = vrot.slane %v1602, 1
      %v1605 = vshll.u32 %v1291, 16
      %v1607 = vrot.slane %v1605, 2
      %v1608 = vor.u32 %v1604, %v1607
      %v1609 = vsel %vm1538, %v1599, %v1608
      %v1611 = vshrl.u32 %v1292, 16
      %v1613 = vrot.slane %v1611, 1
      %v1614 = vshll.u32 %v1292, 16
      %v1616 = vrot.slane %v1614, 2
      %v1617 = vor.u32 %v1613, %v1616
      %v1618 = vsel %vm1538, %v1608, %v1617
      %v1620 = vshrl.u32 %v1293, 16
      %v1622 = vrot.slane %v1620, 1
      %v1623 = vshll.u32 %v1293, 16
      %v1625 = vrot.slane %v1623, 2
      %v1626 = vor.u32 %v1622, %v1625
      %v1627 = vsel %vm1538, %v1617, %v1626
      %v1629 = vshrl.u32 %v1294, 16
      %v1631 = vrot.slane %v1629, 1
      %v1632 = vshll.u32 %v1294, 16
      %v1634 = vrot.slane %v1632, 2
      %v1635 = vor.u32 %v1631, %v1634
      %v1636 = vsel %vm1538, %v1626, %v1635
      %v1638 = vshrl.u32 %v1295, 16
      %v1640 = vrot.slane %v1638, 1
      %v1641 = vshll.u32 %v1295, 16
      %v1643 = vrot.slane %v1641, 2
      %v1644 = vor.u32 %v1640, %v1643
      %v1645 = vsel %vm1538, %v1635, %v1644
      %v1647 = vshrl.u32 %v1296, 16
      %v1649 = vrot.slane %v1647, 1
      %v1650 = vshll.u32 %v1296, 16
      %v1652 = vrot.slane %v1650, 2
      %v1653 = vor.u32 %v1649, %v1652
      %v1654 = vsel %vm1538, %v1644, %v1653
      %v1656 = vshrl.u32 %v1297, 16
      %v1658 = vrot.slane %v1656, 1
      %v1659 = vshll.u32 %v1297, 16
      %v1661 = vrot.slane %v1659, 2
      %v1662 = vor.u32 %v1658, %v1661
      %v1663 = vsel %vm1538, %v1653, %v1662
      %v1665 = vshrl.u32 %v1298, 16
      %v1667 = vrot.slane %v1665, 1
      %v1668 = vshll.u32 %v1298, 16
      %v1670 = vrot.slane %v1668, 2
      %v1671 = vor.u32 %v1667, %v1670
      %v1672 = vsel %vm1538, %v1662, %v1671
      %v1674 = vshrl.u32 %v1299, 16
      %v1676 = vrot.slane %v1674, 1
      %v1677 = vshll.u32 %v1299, 16
      %v1679 = vrot.slane %v1677, 2
      %v1680 = vor.u32 %v1676, %v1679
      %v1681 = vsel %vm1538, %v1671, %v1680
      %v1683 = vshrl.u32 %v1300, 16
      %v1685 = vrot.slane %v1683, 1
      %v1686 = vshll.u32 %v1300, 16
      %v1688 = vrot.slane %v1686, 2
      %v1689 = vor.u32 %v1685, %v1688
      %v1690 = vsel %vm1538, %v1680, %v1689
      %v1692 = vshrl.u32 %v1301, 16
      %v1694 = vrot.slane %v1692, 1
      %v1695 = vshll.u32 %v1301, 16
      %v1697 = vrot.slane %v1695, 2
      %v1698 = vor.u32 %v1694, %v1697
      %v1699 = vsel %vm1538, %v1689, %v1698
      %v1701 = vshrl.u32 %v1537, 16
      %v1703 = vrot.slane %v1701, 1
      %v1704 = vshll.u32 %v1537, 16
      %v1706 = vrot.slane %v1704, 2
      %v1707 = vor.u32 %v1703, %v1706
      %v1708 = vsel %vm1538, %v1698, %v1707
      %v1710 = vsel %vm639, %v1555, 0
      %v1713 = vsel %vm639, %v1564, 0
      %v1716 = vsel %vm639, %v1573, 0
      %v1719 = vsel %vm639, %v1582, 0
      %v1722 = vsel %vm639, %v1591, 0
      %v1725 = vsel %vm639, %v1600, 0
      %v1728 = vsel %vm639, %v1609, 0
      %v1731 = vsel %vm639, %v1618, 0
      %v1734 = vsel %vm639, %v1627, 0
      %v1737 = vsel %vm639, %v1636, 0
      %v1740 = vsel %vm639, %v1645, 0
      %v1743 = vsel %vm639, %v1654, 0
      %v1746 = vsel %vm639, %v1663, 0
      %v1749 = vsel %vm639, %v1672, 0
      %v1752 = vsel %vm639, %v1681, 0
      %v1755 = vsel %vm639, %v1690, 0
      %v1758 = vsel %vm639, %v1699, 0
      %v1761 = vsel %vm639, %v1708, 0
      %v1764 = vsel %vm694, %v1534, 0
      %1766 = vmatpush.bf16.msra.mxu0 0
      %1767 = vmatpush.bf16.msra.mxu0 0
      %1768 = vmatpush.bf16.msra.mxu0 0
      %1769 = vmatpush.bf16.msra.mxu0 0
      %1770 = vmatpush.bf16.msra.mxu0 0
      %1771 = vmatpush.bf16.msra.mxu0 0
      %1772 = vmatpush.bf16.msra.mxu0 0
      %1773 = vmatpush.bf16.msra.mxu0 %v1764
      %1774 = vmatmul.bf16.gmra.mxu0 %v1710
      %v1775 = vpop.f32.mrf.mxu0
      %v1776 = vadd.f32 0.0, %v1775
      %v1777 = vpop.f32.mrf.mxu0
      %v1778 = vadd.f32 0.0, %v1777
      %1779 = vmatmul.bf16.gmra.mxu0 %v1713
      %v1780 = vpop.f32.mrf.mxu0
      %v1781 = vadd.f32 0.0, %v1780
      %v1782 = vpop.f32.mrf.mxu0
      %v1783 = vadd.f32 0.0, %v1782
      %1784 = vmatmul.bf16.gmra.mxu0 %v1716
      %v1785 = vpop.f32.mrf.mxu0
      %v1786 = vadd.f32 0.0, %v1785
      %v1787 = vpop.f32.mrf.mxu0
      %v1788 = vadd.f32 0.0, %v1787
      %1789 = vmatmul.bf16.gmra.mxu0 %v1719
      %v1790 = vpop.f32.mrf.mxu0
      %v1791 = vadd.f32 0.0, %v1790
      %v1792 = vpop.f32.mrf.mxu0
      %v1793 = vadd.f32 0.0, %v1792
      %1794 = vmatmul.bf16.gmra.mxu0 %v1722
      %v1795 = vpop.f32.mrf.mxu0
      %v1796 = vadd.f32 0.0, %v1795
      %v1797 = vpop.f32.mrf.mxu0
      %v1798 = vadd.f32 0.0, %v1797
      %1799 = vmatmul.bf16.gmra.mxu0 %v1725
      %v1800 = vpop.f32.mrf.mxu0
      %v1801 = vadd.f32 0.0, %v1800
      %v1802 = vpop.f32.mrf.mxu0
      %v1803 = vadd.f32 0.0, %v1802
      %1804 = vmatmul.bf16.gmra.mxu0 %v1728
      %v1805 = vpop.f32.mrf.mxu0
      %v1806 = vadd.f32 0.0, %v1805
      %v1807 = vpop.f32.mrf.mxu0
      %v1808 = vadd.f32 0.0, %v1807
      %1809 = vmatmul.bf16.gmra.mxu0 %v1731
      %v1810 = vpop.f32.mrf.mxu0
      %v1811 = vadd.f32 0.0, %v1810
      %v1812 = vpop.f32.mrf.mxu0
      %v1813 = vadd.f32 0.0, %v1812
      %1814 = vmatmul.bf16.gmra.mxu0 %v1734
      %v1815 = vpop.f32.mrf.mxu0
      %v1816 = vadd.f32 0.0, %v1815
      %v1817 = vpop.f32.mrf.mxu0
      %v1818 = vadd.f32 0.0, %v1817
      %1819 = vmatmul.bf16.gmra.mxu0 %v1737
      %v1820 = vpop.f32.mrf.mxu0
      %v1821 = vadd.f32 0.0, %v1820
      %v1822 = vpop.f32.mrf.mxu0
      %v1823 = vadd.f32 0.0, %v1822
      %1824 = vmatmul.bf16.gmra.mxu0 %v1740
      %v1825 = vpop.f32.mrf.mxu0
      %v1826 = vadd.f32 0.0, %v1825
      %v1827 = vpop.f32.mrf.mxu0
      %v1828 = vadd.f32 0.0, %v1827
      %1829 = vmatmul.bf16.gmra.mxu0 %v1743
      %v1830 = vpop.f32.mrf.mxu0
      %v1831 = vadd.f32 0.0, %v1830
      %v1832 = vpop.f32.mrf.mxu0
      %v1833 = vadd.f32 0.0, %v1832
      %1834 = vmatmul.bf16.gmra.mxu0 %v1746
      %v1835 = vpop.f32.mrf.mxu0
      %v1836 = vadd.f32 0.0, %v1835
      %v1837 = vpop.f32.mrf.mxu0
      %v1838 = vadd.f32 0.0, %v1837
      %1839 = vmatmul.bf16.gmra.mxu0 %v1749
      %v1840 = vpop.f32.mrf.mxu0
      %v1841 = vadd.f32 0.0, %v1840
      %v1842 = vpop.f32.mrf.mxu0
      %v1843 = vadd.f32 0.0, %v1842
      %1844 = vmatmul.bf16.gmra.mxu0 %v1752
      %v1845 = vpop.f32.mrf.mxu0
      %v1846 = vadd.f32 0.0, %v1845
      %v1847 = vpop.f32.mrf.mxu0
      %v1848 = vadd.f32 0.0, %v1847
      %1849 = vmatmul.bf16.gmra.mxu0 %v1755
      %v1850 = vpop.f32.mrf.mxu0
      %v1851 = vadd.f32 0.0, %v1850
      %v1852 = vpop.f32.mrf.mxu0
      %v1853 = vadd.f32 0.0, %v1852
      %1854 = vmatmul.bf16.gmra.mxu0 %v1758
      %v1855 = vpop.f32.mrf.mxu0
      %v1856 = vadd.f32 0.0, %v1855
      %v1857 = vpop.f32.mrf.mxu0
      %v1858 = vadd.f32 0.0, %v1857
      %1859 = vmatmul.bf16.gmra.mxu0 %v1761
      %v1860 = vpop.f32.mrf.mxu0
      %v1861 = vadd.f32 0.0, %v1860
      %v1862 = vpop.f32.mrf.mxu0
      %v1863 = vadd.f32 0.0, %v1862
      %1864 = vdwg.mxu0
      %v1865 = vadd.f32 %v1496, %v1776
      %v1866 = vadd.f32 %v1497, %v1778
      %v1867 = vadd.f32 %v1498, %v1781
      %v1868 = vadd.f32 %v1499, %v1783
      %v1869 = vadd.f32 %v1500, %v1786
      %v1870 = vadd.f32 %v1501, %v1788
      %v1871 = vadd.f32 %v1502, %v1791
      %v1872 = vadd.f32 %v1503, %v1793
      %v1873 = vadd.f32 %v1504, %v1796
      %v1874 = vadd.f32 %v1505, %v1798
      %v1875 = vadd.f32 %v1506, %v1801
      %v1876 = vadd.f32 %v1507, %v1803
      %v1877 = vadd.f32 %v1508, %v1806
      %v1878 = vadd.f32 %v1509, %v1808
      %v1879 = vadd.f32 %v1510, %v1811
      %v1880 = vadd.f32 %v1511, %v1813
      %v1881 = vadd.f32 %v1512, %v1816
      %v1882 = vadd.f32 %v1513, %v1818
      %v1883 = vadd.f32 %v1514, %v1821
      %v1884 = vadd.f32 %v1515, %v1823
      %v1885 = vadd.f32 %v1516, %v1826
      %v1886 = vadd.f32 %v1517, %v1828
      %v1887 = vadd.f32 %v1518, %v1831
      %v1888 = vadd.f32 %v1519, %v1833
      %v1889 = vadd.f32 %v1520, %v1836
      %v1890 = vadd.f32 %v1521, %v1838
      %v1891 = vadd.f32 %v1522, %v1841
      %v1892 = vadd.f32 %v1523, %v1843
      %v1893 = vadd.f32 %v1524, %v1846
      %v1894 = vadd.f32 %v1525, %v1848
      %v1895 = vadd.f32 %v1526, %v1851
      %v1896 = vadd.f32 %v1527, %v1853
      %v1897 = vadd.f32 %v1528, %v1856
      %v1898 = vadd.f32 %v1529, %v1858
      %v1899 = vadd.f32 %v1530, %v1861
      %v1900 = vadd.f32 %v1531, %v1863
      %v1901 = vld [vmem:[%s352 + $0x8] sm:$0xc]
      %s1902 = scalar_lea.vmem %s1, 10
      %v1903 = vld [vmem:[%s1902] sm:$0x3]
      %v1905 = vunpack.c.l.b16 %v1901
      %v1906 = vpack.c.b16 %v1248, %v1905
      %vm1907 = vcmask 1045504
      %v1908 = vrot.slane %v1906, 2
      %v1909 = vrot.slane %v1285, 2
      %v1910 = vsel %vm1907, %v1908, %v1909
      %v1911 = vrot.slane %v1286, 2
      %v1912 = vsel %vm1907, %v1909, %v1911
      %v1913 = vrot.slane %v1287, 2
      %v1914 = vsel %vm1907, %v1911, %v1913
      %v1915 = vrot.slane %v1288, 2
      %v1916 = vsel %vm1907, %v1913, %v1915
      %v1917 = vrot.slane %v1289, 2
      %v1918 = vsel %vm1907, %v1915, %v1917
      %v1919 = vrot.slane %v1290, 2
      %v1920 = vsel %vm1907, %v1917, %v1919
      %v1921 = vrot.slane %v1291, 2
      %v1922 = vsel %vm1907, %v1919, %v1921
      %v1923 = vrot.slane %v1292, 2
      %v1924 = vsel %vm1907, %v1921, %v1923
      %v1925 = vrot.slane %v1293, 2
      %v1926 = vsel %vm1907, %v1923, %v1925
      %v1927 = vrot.slane %v1294, 2
      %v1928 = vsel %vm1907, %v1925, %v1927
      %v1929 = vrot.slane %v1295, 2
      %v1930 = vsel %vm1907, %v1927, %v1929
      %v1931 = vrot.slane %v1296, 2
      %v1932 = vsel %vm1907, %v1929, %v1931
      %v1933 = vrot.slane %v1297, 2
      %v1934 = vsel %vm1907, %v1931, %v1933
      %v1935 = vrot.slane %v1298, 2
      %v1936 = vsel %vm1907, %v1933, %v1935
      %v1937 = vrot.slane %v1299, 2
      %v1938 = vsel %vm1907, %v1935, %v1937
      %v1939 = vrot.slane %v1300, 2
      %v1940 = vsel %vm1907, %v1937, %v1939
      %v1941 = vrot.slane %v1301, 2
      %v1942 = vsel %vm1907, %v1939, %v1941
      %v1943 = vrot.slane %v1537, 2
      %v1944 = vsel %vm1907, %v1941, %v1943
      %v1946 = vsel %vm639, %v1910, 0
      %v1949 = vsel %vm639, %v1912, 0
      %v1952 = vsel %vm639, %v1914, 0
      %v1955 = vsel %vm639, %v1916, 0
      %v1958 = vsel %vm639, %v1918, 0
      %v1961 = vsel %vm639, %v1920, 0
      %v1964 = vsel %vm639, %v1922, 0
      %v1967 = vsel %vm639, %v1924, 0
      %v1970 = vsel %vm639, %v1926, 0
      %v1973 = vsel %vm639, %v1928, 0
      %v1976 = vsel %vm639, %v1930, 0
      %v1979 = vsel %vm639, %v1932, 0
      %v1982 = vsel %vm639, %v1934, 0
      %v1985 = vsel %vm639, %v1936, 0
      %v1988 = vsel %vm639, %v1938, 0
      %v1991 = vsel %vm639, %v1940, 0
      %v1994 = vsel %vm639, %v1942, 0
      %v1997 = vsel %vm639, %v1944, 0
      %v2000 = vsel %vm694, %v1903, 0
      %2002 = vmatpush.bf16.msra.mxu0 0
      %2003 = vmatpush.bf16.msra.mxu0 0
      %2004 = vmatpush.bf16.msra.mxu0 0
      %2005 = vmatpush.bf16.msra.mxu0 0
      %2006 = vmatpush.bf16.msra.mxu0 0
      %2007 = vmatpush.bf16.msra.mxu0 0
      %2008 = vmatpush.bf16.msra.mxu0 0
      %2009 = vmatpush.bf16.msra.mxu0 %v2000
      %2010 = vmatmul.bf16.gmra.mxu0 %v1946
      %v2011 = vpop.f32.mrf.mxu0
      %v2012 = vadd.f32 0.0, %v2011
      %v2013 = vpop.f32.mrf.mxu0
      %v2014 = vadd.f32 0.0, %v2013
      %2015 = vmatmul.bf16.gmra.mxu0 %v1949
      %v2016 = vpop.f32.mrf.mxu0
      %v2017 = vadd.f32 0.0, %v2016
      %v2018 = vpop.f32.mrf.mxu0
      %v2019 = vadd.f32 0.0, %v2018
      %2020 = vmatmul.bf16.gmra.mxu0 %v1952
      %v2021 = vpop.f32.mrf.mxu0
      %v2022 = vadd.f32 0.0, %v2021
      %v2023 = vpop.f32.mrf.mxu0
      %v2024 = vadd.f32 0.0, %v2023
      %2025 = vmatmul.bf16.gmra.mxu0 %v1955
      %v2026 = vpop.f32.mrf.mxu0
      %v2027 = vadd.f32 0.0, %v2026
      %v2028 = vpop.f32.mrf.mxu0
      %v2029 = vadd.f32 0.0, %v2028
      %2030 = vmatmul.bf16.gmra.mxu0 %v1958
      %v2031 = vpop.f32.mrf.mxu0
      %v2032 = vadd.f32 0.0, %v2031
      %v2033 = vpop.f32.mrf.mxu0
      %v2034 = vadd.f32 0.0, %v2033
      %2035 = vmatmul.bf16.gmra.mxu0 %v1961
      %v2036 = vpop.f32.mrf.mxu0
      %v2037 = vadd.f32 0.0, %v2036
      %v2038 = vpop.f32.mrf.mxu0
      %v2039 = vadd.f32 0.0, %v2038
      %2040 = vmatmul.bf16.gmra.mxu0 %v1964
      %v2041 = vpop.f32.mrf.mxu0
      %v2042 = vadd.f32 0.0, %v2041
      %v2043 = vpop.f32.mrf.mxu0
      %v2044 = vadd.f32 0.0, %v2043
      %2045 = vmatmul.bf16.gmra.mxu0 %v1967
      %v2046 = vpop.f32.mrf.mxu0
      %v2047 = vadd.f32 0.0, %v2046
      %v2048 = vpop.f32.mrf.mxu0
      %v2049 = vadd.f32 0.0, %v2048
      %2050 = vmatmul.bf16.gmra.mxu0 %v1970
      %v2051 = vpop.f32.mrf.mxu0
      %v2052 = vadd.f32 0.0, %v2051
      %v2053 = vpop.f32.mrf.mxu0
      %v2054 = vadd.f32 0.0, %v2053
      %2055 = vmatmul.bf16.gmra.mxu0 %v1973
      %v2056 = vpop.f32.mrf.mxu0
      %v2057 = vadd.f32 0.0, %v2056
      %v2058 = vpop.f32.mrf.mxu0
      %v2059 = vadd.f32 0.0, %v2058
      %2060 = vmatmul.bf16.gmra.mxu0 %v1976
      %v2061 = vpop.f32.mrf.mxu0
      %v2062 = vadd.f32 0.0, %v2061
      %v2063 = vpop.f32.mrf.mxu0
      %v2064 = vadd.f32 0.0, %v2063
      %2065 = vmatmul.bf16.gmra.mxu0 %v1979
      %v2066 = vpop.f32.mrf.mxu0
      %v2067 = vadd.f32 0.0, %v2066
      %v2068 = vpop.f32.mrf.mxu0
      %v2069 = vadd.f32 0.0, %v2068
      %2070 = vmatmul.bf16.gmra.mxu0 %v1982
      %v2071 = vpop.f32.mrf.mxu0
      %v2072 = vadd.f32 0.0, %v2071
      %v2073 = vpop.f32.mrf.mxu0
      %v2074 = vadd.f32 0.0, %v2073
      %2075 = vmatmul.bf16.gmra.mxu0 %v1985
      %v2076 = vpop.f32.mrf.mxu0
      %v2077 = vadd.f32 0.0, %v2076
      %v2078 = vpop.f32.mrf.mxu0
      %v2079 = vadd.f32 0.0, %v2078
      %2080 = vmatmul.bf16.gmra.mxu0 %v1988
      %v2081 = vpop.f32.mrf.mxu0
      %v2082 = vadd.f32 0.0, %v2081
      %v2083 = vpop.f32.mrf.mxu0
      %v2084 = vadd.f32 0.0, %v2083
      %2085 = vmatmul.bf16.gmra.mxu0 %v1991
      %v2086 = vpop.f32.mrf.mxu0
      %v2087 = vadd.f32 0.0, %v2086
      %v2088 = vpop.f32.mrf.mxu0
      %v2089 = vadd.f32 0.0, %v2088
      %2090 = vmatmul.bf16.gmra.mxu0 %v1994
      %v2091 = vpop.f32.mrf.mxu0
      %v2092 = vadd.f32 0.0, %v2091
      %v2093 = vpop.f32.mrf.mxu0
      %v2094 = vadd.f32 0.0, %v2093
      %2095 = vmatmul.bf16.gmra.mxu0 %v1997
      %v2096 = vpop.f32.mrf.mxu0
      %v2097 = vadd.f32 0.0, %v2096
      %v2098 = vpop.f32.mrf.mxu0
      %v2099 = vadd.f32 0.0, %v2098
      %2100 = vdwg.mxu0
      %v2101 = vadd.f32 %v1865, %v2012
      %v2102 = vadd.f32 %v1866, %v2014
      %v2103 = vadd.f32 %v1867, %v2017
      %v2104 = vadd.f32 %v1868, %v2019
      %v2105 = vadd.f32 %v1869, %v2022
      %v2106 = vadd.f32 %v1870, %v2024
      %v2107 = vadd.f32 %v1871, %v2027
      %v2108 = vadd.f32 %v1872, %v2029
      %v2109 = vadd.f32 %v1873, %v2032
      %v2110 = vadd.f32 %v1874, %v2034
      %v2111 = vadd.f32 %v1875, %v2037
      %v2112 = vadd.f32 %v1876, %v2039
      %v2113 = vadd.f32 %v1877, %v2042
      %v2114 = vadd.f32 %v1878, %v2044
      %v2115 = vadd.f32 %v1879, %v2047
      %v2116 = vadd.f32 %v1880, %v2049
      %v2117 = vadd.f32 %v1881, %v2052
      %v2118 = vadd.f32 %v1882, %v2054
      %v2119 = vadd.f32 %v1883, %v2057
      %v2120 = vadd.f32 %v1884, %v2059
      %v2121 = vadd.f32 %v1885, %v2062
      %v2122 = vadd.f32 %v1886, %v2064
      %v2123 = vadd.f32 %v1887, %v2067
      %v2124 = vadd.f32 %v1888, %v2069
      %v2125 = vadd.f32 %v1889, %v2072
      %v2126 = vadd.f32 %v1890, %v2074
      %v2127 = vadd.f32 %v1891, %v2077
      %v2128 = vadd.f32 %v1892, %v2079
      %v2129 = vadd.f32 %v1893, %v2082
      %v2130 = vadd.f32 %v1894, %v2084
      %v2131 = vadd.f32 %v1895, %v2087
      %v2132 = vadd.f32 %v1896, %v2089
      %v2133 = vadd.f32 %v1897, %v2092
      %v2134 = vadd.f32 %v1898, %v2094
      %v2135 = vadd.f32 %v1899, %v2097
      %v2136 = vadd.f32 %v1900, %v2099
      %v2137 = vld [vmem:[%s352 + $0x10] sm:$0xc]
      %v2138 = vld [vmem:[%s352 + $0x14] sm:$0xf]
      %v2139 = vld [vmem:[%s352 + $0x18] sm:$0xf]
      %v2140 = vld [vmem:[%s352 + $0x1c] sm:$0xf]
      %v2141 = vld [vmem:[%s352 + $0x20] sm:$0xf]
      %v2142 = vld [vmem:[%s352 + $0x24] sm:$0xf]
      %v2143 = vld [vmem:[%s352 + $0x28] sm:$0xf]
      %v2144 = vld [vmem:[%s352 + $0x2c] sm:$0xf]
      %v2145 = vld [vmem:[%s352 + $0x30] sm:$0xf]
      %v2146 = vld [vmem:[%s352 + $0x34] sm:$0xf]
      %v2147 = vld [vmem:[%s352 + $0x38] sm:$0xf]
      %v2148 = vld [vmem:[%s352 + $0x3c] sm:$0xf]
      %v2149 = vld [vmem:[%s352 + $0x40] sm:$0xf]
      %v2150 = vld [vmem:[%s352 + $0x44] sm:$0xf]
      %v2151 = vld [vmem:[%s352 + $0x48] sm:$0xf]
      %v2152 = vld [vmem:[%s352 + $0x4c] sm:$0xf]
      %v2153 = vld [vmem:[%s352 + $0x50] sm:$0xf]
      %v2154 = vld [vmem:[%s352 + $0x54] sm:$0xf]
      %v2155 = vld [vmem:[%s352 + $0x58] sm:$0xf]
      %v2156 = vld [vmem:[%s352 + $0x5c] sm:$0xf]
      %v2157 = vld [vmem:[%s352 + $0x60] sm:$0xf]
      %v2158 = vld [vmem:[%s352 + $0x64] sm:$0xf]
      %v2159 = vld [vmem:[%s352 + $0x68] sm:$0xf]
      %v2160 = vld [vmem:[%s352 + $0x6c] sm:$0xf]
      %v2161 = vld [vmem:[%s352 + $0x70] sm:$0xf]
      %v2162 = vld [vmem:[%s352 + $0x74] sm:$0xf]
      %v2163 = vld [vmem:[%s352 + $0x78] sm:$0xf]
      %v2164 = vld [vmem:[%s352 + $0x7c] sm:$0xf]
      %v2165 = vld [vmem:[%s352 + $0x80] sm:$0xf]
      %v2166 = vld [vmem:[%s352 + $0x84] sm:$0xf]
      %v2167 = vld [vmem:[%s352 + $0x88] sm:$0xf]
      %v2168 = vld [vmem:[%s352 + $0x8c] sm:$0xf]
      %v2169 = vld [vmem:[%s352 + $0x90] sm:$0xf]
      %v2170 = vld [vmem:[%s352 + $0x94] sm:$0xf]
      %v2171 = vld [vmem:[%s352 + $0x98] sm:$0xf]
      %v2172 = vld [vmem:[%s352 + $0x9c] sm:$0xf]
      %v2173 = vld [vmem:[%s352 + $0xa0] sm:$0x3]
      %s2174 = scalar_lea.vmem %s1, 12
      %v2175 = vld [vmem:[%s2174] sm:$0x3]
      %v2213 = vunpack.c.l.b16 %v2137
      %v2214 = vunpack.c.l.b16 %v2138
      %v2215 = vunpack.c.l.b16 %v2139
      %v2216 = vunpack.c.l.b16 %v2140
      %v2217 = vunpack.c.l.b16 %v2141
      %v2218 = vunpack.c.l.b16 %v2142
      %v2219 = vunpack.c.l.b16 %v2143
      %v2220 = vunpack.c.l.b16 %v2144
      %v2221 = vunpack.c.l.b16 %v2145
      %v2222 = vunpack.c.l.b16 %v2146
      %v2223 = vunpack.c.l.b16 %v2147
      %v2224 = vunpack.c.l.b16 %v2148
      %v2225 = vunpack.c.l.b16 %v2149
      %v2226 = vunpack.c.l.b16 %v2150
      %v2227 = vunpack.c.l.b16 %v2151
      %v2228 = vunpack.c.l.b16 %v2152
      %v2229 = vunpack.c.l.b16 %v2153
      %v2230 = vunpack.c.l.b16 %v2154
      %v2231 = vunpack.c.l.b16 %v2155
      %v2232 = vunpack.c.l.b16 %v2156
      %v2233 = vunpack.c.l.b16 %v2157
      %v2234 = vunpack.c.l.b16 %v2158
      %v2235 = vunpack.c.l.b16 %v2159
      %v2236 = vunpack.c.l.b16 %v2160
      %v2237 = vunpack.c.l.b16 %v2161
      %v2238 = vunpack.c.l.b16 %v2162
      %v2239 = vunpack.c.l.b16 %v2163
      %v2240 = vunpack.c.l.b16 %v2164
      %v2241 = vunpack.c.l.b16 %v2165
      %v2242 = vunpack.c.l.b16 %v2166
      %v2243 = vunpack.c.l.b16 %v2167
      %v2244 = vunpack.c.l.b16 %v2168
      %v2245 = vunpack.c.l.b16 %v2169
      %v2246 = vunpack.c.l.b16 %v2170
      %v2247 = vunpack.c.l.b16 %v2171
      %v2248 = vunpack.c.l.b16 %v2172
      %v2249 = vunpack.c.l.b16 %v2173
      %v2250 = vpack.c.b16 %v2214, %v2213
      %v2251 = vpack.c.b16 %v2216, %v2215
      %v2252 = vpack.c.b16 %v2218, %v2217
      %v2253 = vpack.c.b16 %v2220, %v2219
      %v2254 = vpack.c.b16 %v2222, %v2221
      %v2255 = vpack.c.b16 %v2224, %v2223
      %v2256 = vpack.c.b16 %v2226, %v2225
      %v2257 = vpack.c.b16 %v2228, %v2227
      %v2258 = vpack.c.b16 %v2230, %v2229
      %v2259 = vpack.c.b16 %v2232, %v2231
      %v2260 = vpack.c.b16 %v2234, %v2233
      %v2261 = vpack.c.b16 %v2236, %v2235
      %v2262 = vpack.c.b16 %v2238, %v2237
      %v2263 = vpack.c.b16 %v2240, %v2239
      %v2264 = vpack.c.b16 %v2242, %v2241
      %v2265 = vpack.c.b16 %v2244, %v2243
      %v2266 = vpack.c.b16 %v2246, %v2245
      %v2267 = vpack.c.b16 %v2248, %v2247
      %v2268 = vpack.c.b16 %v2249, %v2249
      %v2269 = vrot.slane %v2250, 2
      %v2270 = vrot.slane %v2251, 2
      %v2271 = vsel %vm1907, %v2269, %v2270
      %v2272 = vrot.slane %v2252, 2
      %v2273 = vsel %vm1907, %v2270, %v2272
      %v2274 = vrot.slane %v2253, 2
      %v2275 = vsel %vm1907, %v2272, %v2274
      %v2276 = vrot.slane %v2254, 2
      %v2277 = vsel %vm1907, %v2274, %v2276
      %v2278 = vrot.slane %v2255, 2
      %v2279 = vsel %vm1907, %v2276, %v2278
      %v2280 = vrot.slane %v2256, 2
      %v2281 = vsel %vm1907, %v2278, %v2280
      %v2282 = vrot.slane %v2257, 2
      %v2283 = vsel %vm1907, %v2280, %v2282
      %v2284 = vrot.slane %v2258, 2
      %v2285 = vsel %vm1907, %v2282, %v2284
      %v2286 = vrot.slane %v2259, 2
      %v2287 = vsel %vm1907, %v2284, %v2286
      %v2288 = vrot.slane %v2260, 2
      %v2289 = vsel %vm1907, %v2286, %v2288
      %v2290 = vrot.slane %v2261, 2
      %v2291 = vsel %vm1907, %v2288, %v2290
      %v2292 = vrot.slane %v2262, 2
      %v2293 = vsel %vm1907, %v2290, %v2292
      %v2294 = vrot.slane %v2263, 2
      %v2295 = vsel %vm1907, %v2292, %v2294
      %v2296 = vrot.slane %v2264, 2
      %v2297 = vsel %vm1907, %v2294, %v2296
      %v2298 = vrot.slane %v2265, 2
      %v2299 = vsel %vm1907, %v2296, %v2298
      %v2300 = vrot.slane %v2266, 2
      %v2301 = vsel %vm1907, %v2298, %v2300
      %v2302 = vrot.slane %v2267, 2
      %v2303 = vsel %vm1907, %v2300, %v2302
      %v2304 = vrot.slane %v2268, 2
      %v2305 = vsel %vm1907, %v2302, %v2304
      %v2307 = vsel %vm639, %v2271, 0
      %v2310 = vsel %vm639, %v2273, 0
      %v2313 = vsel %vm639, %v2275, 0
      %v2316 = vsel %vm639, %v2277, 0
      %v2319 = vsel %vm639, %v2279, 0
      %v2322 = vsel %vm639, %v2281, 0
      %v2325 = vsel %vm639, %v2283, 0
      %v2328 = vsel %vm639, %v2285, 0
      %v2331 = vsel %vm639, %v2287, 0
      %v2334 = vsel %vm639, %v2289, 0
      %v2337 = vsel %vm639, %v2291, 0
      %v2340 = vsel %vm639, %v2293, 0
      %v2343 = vsel %vm639, %v2295, 0
      %v2346 = vsel %vm639, %v2297, 0
      %v2349 = vsel %vm639, %v2299, 0
      %v2352 = vsel %vm639, %v2301, 0
      %v2355 = vsel %vm639, %v2303, 0
      %v2358 = vsel %vm639, %v2305, 0
      %v2361 = vsel %vm694, %v2175, 0
      %2363 = vmatpush.bf16.msra.mxu0 0
      %2364 = vmatpush.bf16.msra.mxu0 0
      %2365 = vmatpush.bf16.msra.mxu0 0
      %2366 = vmatpush.bf16.msra.mxu0 0
      %2367 = vmatpush.bf16.msra.mxu0 0
      %2368 = vmatpush.bf16.msra.mxu0 0
      %2369 = vmatpush.bf16.msra.mxu0 0
      %2370 = vmatpush.bf16.msra.mxu0 %v2361
      %2371 = vmatmul.bf16.gmra.mxu0 %v2307
      %v2372 = vpop.f32.mrf.mxu0
      %v2373 = vadd.f32 0.0, %v2372
      %v2374 = vpop.f32.mrf.mxu0
      %v2375 = vadd.f32 0.0, %v2374
      %2376 = vmatmul.bf16.gmra.mxu0 %v2310
      %v2377 = vpop.f32.mrf.mxu0
      %v2378 = vadd.f32 0.0, %v2377
      %v2379 = vpop.f32.mrf.mxu0
      %v2380 = vadd.f32 0.0, %v2379
      %2381 = vmatmul.bf16.gmra.mxu0 %v2313
      %v2382 = vpop.f32.mrf.mxu0
      %v2383 = vadd.f32 0.0, %v2382
      %v2384 = vpop.f32.mrf.mxu0
      %v2385 = vadd.f32 0.0, %v2384
      %2386 = vmatmul.bf16.gmra.mxu0 %v2316
      %v2387 = vpop.f32.mrf.mxu0
      %v2388 = vadd.f32 0.0, %v2387
      %v2389 = vpop.f32.mrf.mxu0
      %v2390 = vadd.f32 0.0, %v2389
      %2391 = vmatmul.bf16.gmra.mxu0 %v2319
      %v2392 = vpop.f32.mrf.mxu0
      %v2393 = vadd.f32 0.0, %v2392
      %v2394 = vpop.f32.mrf.mxu0
      %v2395 = vadd.f32 0.0, %v2394
      %2396 = vmatmul.bf16.gmra.mxu0 %v2322
      %v2397 = vpop.f32.mrf.mxu0
      %v2398 = vadd.f32 0.0, %v2397
      %v2399 = vpop.f32.mrf.mxu0
      %v2400 = vadd.f32 0.0, %v2399
      %2401 = vmatmul.bf16.gmra.mxu0 %v2325
      %v2402 = vpop.f32.mrf.mxu0
      %v2403 = vadd.f32 0.0, %v2402
      %v2404 = vpop.f32.mrf.mxu0
      %v2405 = vadd.f32 0.0, %v2404
      %2406 = vmatmul.bf16.gmra.mxu0 %v2328
      %v2407 = vpop.f32.mrf.mxu0
      %v2408 = vadd.f32 0.0, %v2407
      %v2409 = vpop.f32.mrf.mxu0
      %v2410 = vadd.f32 0.0, %v2409
      %2411 = vmatmul.bf16.gmra.mxu0 %v2331
      %v2412 = vpop.f32.mrf.mxu0
      %v2413 = vadd.f32 0.0, %v2412
      %v2414 = vpop.f32.mrf.mxu0
      %v2415 = vadd.f32 0.0, %v2414
      %2416 = vmatmul.bf16.gmra.mxu0 %v2334
      %v2417 = vpop.f32.mrf.mxu0
      %v2418 = vadd.f32 0.0, %v2417
      %v2419 = vpop.f32.mrf.mxu0
      %v2420 = vadd.f32 0.0, %v2419
      %2421 = vmatmul.bf16.gmra.mxu0 %v2337
      %v2422 = vpop.f32.mrf.mxu0
      %v2423 = vadd.f32 0.0, %v2422
      %v2424 = vpop.f32.mrf.mxu0
      %v2425 = vadd.f32 0.0, %v2424
      %2426 = vmatmul.bf16.gmra.mxu0 %v2340
      %v2427 = vpop.f32.mrf.mxu0
      %v2428 = vadd.f32 0.0, %v2427
      %v2429 = vpop.f32.mrf.mxu0
      %v2430 = vadd.f32 0.0, %v2429
      %2431 = vmatmul.bf16.gmra.mxu0 %v2343
      %v2432 = vpop.f32.mrf.mxu0
      %v2433 = vadd.f32 0.0, %v2432
      %v2434 = vpop.f32.mrf.mxu0
      %v2435 = vadd.f32 0.0, %v2434
      %2436 = vmatmul.bf16.gmra.mxu0 %v2346
      %v2437 = vpop.f32.mrf.mxu0
      %v2438 = vadd.f32 0.0, %v2437
      %v2439 = vpop.f32.mrf.mxu0
      %v2440 = vadd.f32 0.0, %v2439
      %2441 = vmatmul.bf16.gmra.mxu0 %v2349
      %v2442 = vpop.f32.mrf.mxu0
      %v2443 = vadd.f32 0.0, %v2442
      %v2444 = vpop.f32.mrf.mxu0
      %v2445 = vadd.f32 0.0, %v2444
      %2446 = vmatmul.bf16.gmra.mxu0 %v2352
      %v2447 = vpop.f32.mrf.mxu0
      %v2448 = vadd.f32 0.0, %v2447
      %v2449 = vpop.f32.mrf.mxu0
      %v2450 = vadd.f32 0.0, %v2449
      %2451 = vmatmul.bf16.gmra.mxu0 %v2355
      %v2452 = vpop.f32.mrf.mxu0
      %v2453 = vadd.f32 0.0, %v2452
      %v2454 = vpop.f32.mrf.mxu0
      %v2455 = vadd.f32 0.0, %v2454
      %2456 = vmatmul.bf16.gmra.mxu0 %v2358
      %v2457 = vpop.f32.mrf.mxu0
      %v2458 = vadd.f32 0.0, %v2457
      %v2459 = vpop.f32.mrf.mxu0
      %v2460 = vadd.f32 0.0, %v2459
      %2461 = vdwg.mxu0
      %v2462 = vadd.f32 %v2101, %v2373
      %v2463 = vadd.f32 %v2102, %v2375
      %v2464 = vadd.f32 %v2103, %v2378
      %v2465 = vadd.f32 %v2104, %v2380
      %v2466 = vadd.f32 %v2105, %v2383
      %v2467 = vadd.f32 %v2106, %v2385
      %v2468 = vadd.f32 %v2107, %v2388
      %v2469 = vadd.f32 %v2108, %v2390
      %v2470 = vadd.f32 %v2109, %v2393
      %v2471 = vadd.f32 %v2110, %v2395
      %v2472 = vadd.f32 %v2111, %v2398
      %v2473 = vadd.f32 %v2112, %v2400
      %v2474 = vadd.f32 %v2113, %v2403
      %v2475 = vadd.f32 %v2114, %v2405
      %v2476 = vadd.f32 %v2115, %v2408
      %v2477 = vadd.f32 %v2116, %v2410
      %v2478 = vadd.f32 %v2117, %v2413
      %v2479 = vadd.f32 %v2118, %v2415
      %v2480 = vadd.f32 %v2119, %v2418
      %v2481 = vadd.f32 %v2120, %v2420
      %v2482 = vadd.f32 %v2121, %v2423
      %v2483 = vadd.f32 %v2122, %v2425
      %v2484 = vadd.f32 %v2123, %v2428
      %v2485 = vadd.f32 %v2124, %v2430
      %v2486 = vadd.f32 %v2125, %v2433
      %v2487 = vadd.f32 %v2126, %v2435
      %v2488 = vadd.f32 %v2127, %v2438
      %v2489 = vadd.f32 %v2128, %v2440
      %v2490 = vadd.f32 %v2129, %v2443
      %v2491 = vadd.f32 %v2130, %v2445
      %v2492 = vadd.f32 %v2131, %v2448
      %v2493 = vadd.f32 %v2132, %v2450
      %v2494 = vadd.f32 %v2133, %v2453
      %v2495 = vadd.f32 %v2134, %v2455
      %v2496 = vadd.f32 %v2135, %v2458
      %v2497 = vadd.f32 %v2136, %v2460
      %v2498 = vld [vmem:[%s352 + $0xa0] sm:$0x7]
      %s2499 = scalar_lea.vmem %s1, 14
      %v2500 = vld [vmem:[%s2499] sm:$0x3]
      %v2502 = vunpack.c.l.b16 %v2498
      %v2503 = vpack.c.b16 %v2502, %v2502
      %vm2504 = vsmask.f32 5376
      %v2506 = vshrl.u32 %v2250, 16
      %v2508 = vrot.slane %v2506, 2
      %v2509 = vshll.u32 %v2250, 16
      %v2511 = vrot.slane %v2509, 3
      %v2512 = vor.u32 %v2508, %v2511
      %v2514 = vshrl.u32 %v2251, 16
      %v2516 = vrot.slane %v2514, 2
      %v2517 = vshll.u32 %v2251, 16
      %v2519 = vrot.slane %v2517, 3
      %v2520 = vor.u32 %v2516, %v2519
      %v2521 = vsel %vm2504, %v2512, %v2520
      %v2523 = vshrl.u32 %v2252, 16
      %v2525 = vrot.slane %v2523, 2
      %v2526 = vshll.u32 %v2252, 16
      %v2528 = vrot.slane %v2526, 3
      %v2529 = vor.u32 %v2525, %v2528
      %v2530 = vsel %vm2504, %v2520, %v2529
      %v2532 = vshrl.u32 %v2253, 16
      %v2534 = vrot.slane %v2532, 2
      %v2535 = vshll.u32 %v2253, 16
      %v2537 = vrot.slane %v2535, 3
      %v2538 = vor.u32 %v2534, %v2537
      %v2539 = vsel %vm2504, %v2529, %v2538
      %v2541 = vshrl.u32 %v2254, 16
      %v2543 = vrot.slane %v2541, 2
      %v2544 = vshll.u32 %v2254, 16
      %v2546 = vrot.slane %v2544, 3
      %v2547 = vor.u32 %v2543, %v2546
      %v2548 = vsel %vm2504, %v2538, %v2547
      %v2550 = vshrl.u32 %v2255, 16
      %v2552 = vrot.slane %v2550, 2
      %v2553 = vshll.u32 %v2255, 16
      %v2555 = vrot.slane %v2553, 3
      %v2556 = vor.u32 %v2552, %v2555
      %v2557 = vsel %vm2504, %v2547, %v2556
      %v2559 = vshrl.u32 %v2256, 16
      %v2561 = vrot.slane %v2559, 2
      %v2562 = vshll.u32 %v2256, 16
      %v2564 = vrot.slane %v2562, 3
      %v2565 = vor.u32 %v2561, %v2564
      %v2566 = vsel %vm2504, %v2556, %v2565
      %v2568 = vshrl.u32 %v2257, 16
      %v2570 = vrot.slane %v2568, 2
      %v2571 = vshll.u32 %v2257, 16
      %v2573 = vrot.slane %v2571, 3
      %v2574 = vor.u32 %v2570, %v2573
      %v2575 = vsel %vm2504, %v2565, %v2574
      %v2577 = vshrl.u32 %v2258, 16
      %v2579 = vrot.slane %v2577, 2
      %v2580 = vshll.u32 %v2258, 16
      %v2582 = vrot.slane %v2580, 3
      %v2583 = vor.u32 %v2579, %v2582
      %v2584 = vsel %vm2504, %v2574, %v2583
      %v2586 = vshrl.u32 %v2259, 16
      %v2588 = vrot.slane %v2586, 2
      %v2589 = vshll.u32 %v2259, 16
      %v2591 = vrot.slane %v2589, 3
      %v2592 = vor.u32 %v2588, %v2591
      %v2593 = vsel %vm2504, %v2583, %v2592
      %v2595 = vshrl.u32 %v2260, 16
      %v2597 = vrot.slane %v2595, 2
      %v2598 = vshll.u32 %v2260, 16
      %v2600 = vrot.slane %v2598, 3
      %v2601 = vor.u32 %v2597, %v2600
      %v2602 = vsel %vm2504, %v2592, %v2601
      %v2604 = vshrl.u32 %v2261, 16
      %v2606 = vrot.slane %v2604, 2
      %v2607 = vshll.u32 %v2261, 16
      %v2609 = vrot.slane %v2607, 3
      %v2610 = vor.u32 %v2606, %v2609
      %v2611 = vsel %vm2504, %v2601, %v2610
      %v2613 = vshrl.u32 %v2262, 16
      %v2615 = vrot.slane %v2613, 2
      %v2616 = vshll.u32 %v2262, 16
      %v2618 = vrot.slane %v2616, 3
      %v2619 = vor.u32 %v2615, %v2618
      %v2620 = vsel %vm2504, %v2610, %v2619
      %v2622 = vshrl.u32 %v2263, 16
      %v2624 = vrot.slane %v2622, 2
      %v2625 = vshll.u32 %v2263, 16
      %v2627 = vrot.slane %v2625, 3
      %v2628 = vor.u32 %v2624, %v2627
      %v2629 = vsel %vm2504, %v2619, %v2628
      %v2631 = vshrl.u32 %v2264, 16
      %v2633 = vrot.slane %v2631, 2
      %v2634 = vshll.u32 %v2264, 16
      %v2636 = vrot.slane %v2634, 3
      %v2637 = vor.u32 %v2633, %v2636
      %v2638 = vsel %vm2504, %v2628, %v2637
      %v2640 = vshrl.u32 %v2265, 16
      %v2642 = vrot.slane %v2640, 2
      %v2643 = vshll.u32 %v2265, 16
      %v2645 = vrot.slane %v2643, 3
      %v2646 = vor.u32 %v2642, %v2645
      %v2647 = vsel %vm2504, %v2637, %v2646
      %v2649 = vshrl.u32 %v2266, 16
      %v2651 = vrot.slane %v2649, 2
      %v2652 = vshll.u32 %v2266, 16
      %v2654 = vrot.slane %v2652, 3
      %v2655 = vor.u32 %v2651, %v2654
      %v2656 = vsel %vm2504, %v2646, %v2655
      %v2658 = vshrl.u32 %v2267, 16
      %v2660 = vrot.slane %v2658, 2
      %v2661 = vshll.u32 %v2267, 16
      %v2663 = vrot.slane %v2661, 3
      %v2664 = vor.u32 %v2660, %v2663
      %v2665 = vsel %vm2504, %v2655, %v2664
      %v2667 = vshrl.u32 %v2503, 16
      %v2669 = vrot.slane %v2667, 2
      %v2670 = vshll.u32 %v2503, 16
      %v2672 = vrot.slane %v2670, 3
      %v2673 = vor.u32 %v2669, %v2672
      %v2674 = vsel %vm2504, %v2664, %v2673
      %v2676 = vsel %vm639, %v2521, 0
      %v2679 = vsel %vm639, %v2530, 0
      %v2682 = vsel %vm639, %v2539, 0
      %v2685 = vsel %vm639, %v2548, 0
      %v2688 = vsel %vm639, %v2557, 0
      %v2691 = vsel %vm639, %v2566, 0
      %v2694 = vsel %vm639, %v2575, 0
      %v2697 = vsel %vm639, %v2584, 0
      %v2700 = vsel %vm639, %v2593, 0
      %v2703 = vsel %vm639, %v2602, 0
      %v2706 = vsel %vm639, %v2611, 0
      %v2709 = vsel %vm639, %v2620, 0
      %v2712 = vsel %vm639, %v2629, 0
      %v2715 = vsel %vm639, %v2638, 0
      %v2718 = vsel %vm639, %v2647, 0
      %v2721 = vsel %vm639, %v2656, 0
      %v2724 = vsel %vm639, %v2665, 0
      %v2727 = vsel %vm639, %v2674, 0
      %v2730 = vsel %vm694, %v2500, 0
      %2732 = vmatpush.bf16.msra.mxu0 0
      %2733 = vmatpush.bf16.msra.mxu0 0
      %2734 = vmatpush.bf16.msra.mxu0 0
      %2735 = vmatpush.bf16.msra.mxu0 0
      %2736 = vmatpush.bf16.msra.mxu0 0
      %2737 = vmatpush.bf16.msra.mxu0 0
      %2738 = vmatpush.bf16.msra.mxu0 0
      %2739 = vmatpush.bf16.msra.mxu0 %v2730
      %2740 = vmatmul.bf16.gmra.mxu0 %v2676
      %v2741 = vpop.f32.mrf.mxu0
      %v2742 = vadd.f32 0.0, %v2741
      %v2743 = vpop.f32.mrf.mxu0
      %v2744 = vadd.f32 0.0, %v2743
      %2745 = vmatmul.bf16.gmra.mxu0 %v2679
      %v2746 = vpop.f32.mrf.mxu0
      %v2747 = vadd.f32 0.0, %v2746
      %v2748 = vpop.f32.mrf.mxu0
      %v2749 = vadd.f32 0.0, %v2748
      %2750 = vmatmul.bf16.gmra.mxu0 %v2682
      %v2751 = vpop.f32.mrf.mxu0
      %v2752 = vadd.f32 0.0, %v2751
      %v2753 = vpop.f32.mrf.mxu0
      %v2754 = vadd.f32 0.0, %v2753
      %2755 = vmatmul.bf16.gmra.mxu0 %v2685
      %v2756 = vpop.f32.mrf.mxu0
      %v2757 = vadd.f32 0.0, %v2756
      %v2758 = vpop.f32.mrf.mxu0
      %v2759 = vadd.f32 0.0, %v2758
      %2760 = vmatmul.bf16.gmra.mxu0 %v2688
      %v2761 = vpop.f32.mrf.mxu0
      %v2762 = vadd.f32 0.0, %v2761
      %v2763 = vpop.f32.mrf.mxu0
      %v2764 = vadd.f32 0.0, %v2763
      %2765 = vmatmul.bf16.gmra.mxu0 %v2691
      %v2766 = vpop.f32.mrf.mxu0
      %v2767 = vadd.f32 0.0, %v2766
      %v2768 = vpop.f32.mrf.mxu0
      %v2769 = vadd.f32 0.0, %v2768
      %2770 = vmatmul.bf16.gmra.mxu0 %v2694
      %v2771 = vpop.f32.mrf.mxu0
      %v2772 = vadd.f32 0.0, %v2771
      %v2773 = vpop.f32.mrf.mxu0
      %v2774 = vadd.f32 0.0, %v2773
      %2775 = vmatmul.bf16.gmra.mxu0 %v2697
      %v2776 = vpop.f32.mrf.mxu0
      %v2777 = vadd.f32 0.0, %v2776
      %v2778 = vpop.f32.mrf.mxu0
      %v2779 = vadd.f32 0.0, %v2778
      %2780 = vmatmul.bf16.gmra.mxu0 %v2700
      %v2781 = vpop.f32.mrf.mxu0
      %v2782 = vadd.f32 0.0, %v2781
      %v2783 = vpop.f32.mrf.mxu0
      %v2784 = vadd.f32 0.0, %v2783
      %2785 = vmatmul.bf16.gmra.mxu0 %v2703
      %v2786 = vpop.f32.mrf.mxu0
      %v2787 = vadd.f32 0.0, %v2786
      %v2788 = vpop.f32.mrf.mxu0
      %v2789 = vadd.f32 0.0, %v2788
      %2790 = vmatmul.bf16.gmra.mxu0 %v2706
      %v2791 = vpop.f32.mrf.mxu0
      %v2792 = vadd.f32 0.0, %v2791
      %v2793 = vpop.f32.mrf.mxu0
      %v2794 = vadd.f32 0.0, %v2793
      %2795 = vmatmul.bf16.gmra.mxu0 %v2709
      %v2796 = vpop.f32.mrf.mxu0
      %v2797 = vadd.f32 0.0, %v2796
      %v2798 = vpop.f32.mrf.mxu0
      %v2799 = vadd.f32 0.0, %v2798
      %2800 = vmatmul.bf16.gmra.mxu0 %v2712
      %v2801 = vpop.f32.mrf.mxu0
      %v2802 = vadd.f32 0.0, %v2801
      %v2803 = vpop.f32.mrf.mxu0
      %v2804 = vadd.f32 0.0, %v2803
      %2805 = vmatmul.bf16.gmra.mxu0 %v2715
      %v2806 = vpop.f32.mrf.mxu0
      %v2807 = vadd.f32 0.0, %v2806
      %v2808 = vpop.f32.mrf.mxu0
      %v2809 = vadd.f32 0.0, %v2808
      %2810 = vmatmul.bf16.gmra.mxu0 %v2718
      %v2811 = vpop.f32.mrf.mxu0
      %v2812 = vadd.f32 0.0, %v2811
      %v2813 = vpop.f32.mrf.mxu0
      %v2814 = vadd.f32 0.0, %v2813
      %2815 = vmatmul.bf16.gmra.mxu0 %v2721
      %v2816 = vpop.f32.mrf.mxu0
      %v2817 = vadd.f32 0.0, %v2816
      %v2818 = vpop.f32.mrf.mxu0
      %v2819 = vadd.f32 0.0, %v2818
      %2820 = vmatmul.bf16.gmra.mxu0 %v2724
      %v2821 = vpop.f32.mrf.mxu0
      %v2822 = vadd.f32 0.0, %v2821
      %v2823 = vpop.f32.mrf.mxu0
      %v2824 = vadd.f32 0.0, %v2823
      %2825 = vmatmul.bf16.gmra.mxu0 %v2727
      %v2826 = vpop.f32.mrf.mxu0
      %v2827 = vadd.f32 0.0, %v2826
      %v2828 = vpop.f32.mrf.mxu0
      %v2829 = vadd.f32 0.0, %v2828
      %2830 = vdwg.mxu0
      %v2831 = vadd.f32 %v2462, %v2742
      %v2832 = vadd.f32 %v2463, %v2744
      %v2833 = vadd.f32 %v2464, %v2747
      %v2834 = vadd.f32 %v2465, %v2749
      %v2835 = vadd.f32 %v2466, %v2752
      %v2836 = vadd.f32 %v2467, %v2754
      %v2837 = vadd.f32 %v2468, %v2757
      %v2838 = vadd.f32 %v2469, %v2759
      %v2839 = vadd.f32 %v2470, %v2762
      %v2840 = vadd.f32 %v2471, %v2764
      %v2841 = vadd.f32 %v2472, %v2767
      %v2842 = vadd.f32 %v2473, %v2769
      %v2843 = vadd.f32 %v2474, %v2772
      %v2844 = vadd.f32 %v2475, %v2774
      %v2845 = vadd.f32 %v2476, %v2777
      %v2846 = vadd.f32 %v2477, %v2779
      %v2847 = vadd.f32 %v2478, %v2782
      %v2848 = vadd.f32 %v2479, %v2784
      %v2849 = vadd.f32 %v2480, %v2787
      %v2850 = vadd.f32 %v2481, %v2789
      %v2851 = vadd.f32 %v2482, %v2792
      %v2852 = vadd.f32 %v2483, %v2794
      %v2853 = vadd.f32 %v2484, %v2797
      %v2854 = vadd.f32 %v2485, %v2799
      %v2855 = vadd.f32 %v2486, %v2802
      %v2856 = vadd.f32 %v2487, %v2804
      %v2857 = vadd.f32 %v2488, %v2807
      %v2858 = vadd.f32 %v2489, %v2809
      %v2859 = vadd.f32 %v2490, %v2812
      %v2860 = vadd.f32 %v2491, %v2814
      %v2861 = vadd.f32 %v2492, %v2817
      %v2862 = vadd.f32 %v2493, %v2819
      %v2863 = vadd.f32 %v2494, %v2822
      %v2864 = vadd.f32 %v2495, %v2824
      %v2865 = vadd.f32 %v2496, %v2827
      %v2866 = vadd.f32 %v2497, %v2829
      %v2867 = vld [vmem:[%s352 + $0x10] sm:$0x8]
      %s2868 = scalar_lea.vmem %s1, 16
      %v2869 = vld [vmem:[%s2868] sm:$0x3]
      %v2871 = vunpack.c.l.b16 %v2867
      %v2872 = vpack.c.b16 %v2214, %v2871
      %vm2873 = vcmask 1044480
      %v2874 = vrot.slane %v2872, 3
      %v2875 = vrot.slane %v2251, 3
      %v2876 = vsel %vm2873, %v2874, %v2875
      %v2877 = vrot.slane %v2252, 3
      %v2878 = vsel %vm2873, %v2875, %v2877
      %v2879 = vrot.slane %v2253, 3
      %v2880 = vsel %vm2873, %v2877, %v2879
      %v2881 = vrot.slane %v2254, 3
      %v2882 = vsel %vm2873, %v2879, %v2881
      %v2883 = vrot.slane %v2255, 3
      %v2884 = vsel %vm2873, %v2881, %v2883
      %v2885 = vrot.slane %v2256, 3
      %v2886 = vsel %vm2873, %v2883, %v2885
      %v2887 = vrot.slane %v2257, 3
      %v2888 = vsel %vm2873, %v2885, %v2887
      %v2889 = vrot.slane %v2258, 3
      %v2890 = vsel %vm2873, %v2887, %v2889
      %v2891 = vrot.slane %v2259, 3
      %v2892 = vsel %vm2873, %v2889, %v2891
      %v2893 = vrot.slane %v2260, 3
      %v2894 = vsel %vm2873, %v2891, %v2893
      %v2895 = vrot.slane %v2261, 3
      %v2896 = vsel %vm2873, %v2893, %v2895
      %v2897 = vrot.slane %v2262, 3
      %v2898 = vsel %vm2873, %v2895, %v2897
      %v2899 = vrot.slane %v2263, 3
      %v2900 = vsel %vm2873, %v2897, %v2899
      %v2901 = vrot.slane %v2264, 3
      %v2902 = vsel %vm2873, %v2899, %v2901
      %v2903 = vrot.slane %v2265, 3
      %v2904 = vsel %vm2873, %v2901, %v2903
      %v2905 = vrot.slane %v2266, 3
      %v2906 = vsel %vm2873, %v2903, %v2905
      %v2907 = vrot.slane %v2267, 3
      %v2908 = vsel %vm2873, %v2905, %v2907
      %v2909 = vrot.slane %v2503, 3
      %v2910 = vsel %vm2873, %v2907, %v2909
      %v2912 = vsel %vm639, %v2876, 0
      %v2915 = vsel %vm639, %v2878, 0
      %v2918 = vsel %vm639, %v2880, 0
      %v2921 = vsel %vm639, %v2882, 0
      %v2924 = vsel %vm639, %v2884, 0
      %v2927 = vsel %vm639, %v2886, 0
      %v2930 = vsel %vm639, %v2888, 0
      %v2933 = vsel %vm639, %v2890, 0
      %v2936 = vsel %vm639, %v2892, 0
      %v2939 = vsel %vm639, %v2894, 0
      %v2942 = vsel %vm639, %v2896, 0
      %v2945 = vsel %vm639, %v2898, 0
      %v2948 = vsel %vm639, %v2900, 0
      %v2951 = vsel %vm639, %v2902, 0
      %v2954 = vsel %vm639, %v2904, 0
      %v2957 = vsel %vm639, %v2906, 0
      %v2960 = vsel %vm639, %v2908, 0
      %v2963 = vsel %vm639, %v2910, 0
      %v2966 = vsel %vm694, %v2869, 0
      %2968 = vmatpush.bf16.msra.mxu0 0
      %2969 = vmatpush.bf16.msra.mxu0 0
      %2970 = vmatpush.bf16.msra.mxu0 0
      %2971 = vmatpush.bf16.msra.mxu0 0
      %2972 = vmatpush.bf16.msra.mxu0 0
      %2973 = vmatpush.bf16.msra.mxu0 0
      %2974 = vmatpush.bf16.msra.mxu0 0
      %2975 = vmatpush.bf16.msra.mxu0 %v2966
      %2976 = vmatmul.bf16.gmra.mxu0 %v2912
      %v2977 = vpop.f32.mrf.mxu0
      %v2978 = vadd.f32 0.0, %v2977
      %v2979 = vpop.f32.mrf.mxu0
      %v2980 = vadd.f32 0.0, %v2979
      %2981 = vmatmul.bf16.gmra.mxu0 %v2915
      %v2982 = vpop.f32.mrf.mxu0
      %v2983 = vadd.f32 0.0, %v2982
      %v2984 = vpop.f32.mrf.mxu0
      %v2985 = vadd.f32 0.0, %v2984
      %2986 = vmatmul.bf16.gmra.mxu0 %v2918
      %v2987 = vpop.f32.mrf.mxu0
      %v2988 = vadd.f32 0.0, %v2987
      %v2989 = vpop.f32.mrf.mxu0
      %v2990 = vadd.f32 0.0, %v2989
      %2991 = vmatmul.bf16.gmra.mxu0 %v2921
      %v2992 = vpop.f32.mrf.mxu0
      %v2993 = vadd.f32 0.0, %v2992
      %v2994 = vpop.f32.mrf.mxu0
      %v2995 = vadd.f32 0.0, %v2994
      %2996 = vmatmul.bf16.gmra.mxu0 %v2924
      %v2997 = vpop.f32.mrf.mxu0
      %v2998 = vadd.f32 0.0, %v2997
      %v2999 = vpop.f32.mrf.mxu0
      %v3000 = vadd.f32 0.0, %v2999
      %3001 = vmatmul.bf16.gmra.mxu0 %v2927
      %v3002 = vpop.f32.mrf.mxu0
      %v3003 = vadd.f32 0.0, %v3002
      %v3004 = vpop.f32.mrf.mxu0
      %v3005 = vadd.f32 0.0, %v3004
      %3006 = vmatmul.bf16.gmra.mxu0 %v2930
      %v3007 = vpop.f32.mrf.mxu0
      %v3008 = vadd.f32 0.0, %v3007
      %v3009 = vpop.f32.mrf.mxu0
      %v3010 = vadd.f32 0.0, %v3009
      %3011 = vmatmul.bf16.gmra.mxu0 %v2933
      %v3012 = vpop.f32.mrf.mxu0
      %v3013 = vadd.f32 0.0, %v3012
      %v3014 = vpop.f32.mrf.mxu0
      %v3015 = vadd.f32 0.0, %v3014
      %3016 = vmatmul.bf16.gmra.mxu0 %v2936
      %v3017 = vpop.f32.mrf.mxu0
      %v3018 = vadd.f32 0.0, %v3017
      %v3019 = vpop.f32.mrf.mxu0
      %v3020 = vadd.f32 0.0, %v3019
      %3021 = vmatmul.bf16.gmra.mxu0 %v2939
      %v3022 = vpop.f32.mrf.mxu0
      %v3023 = vadd.f32 0.0, %v3022
      %v3024 = vpop.f32.mrf.mxu0
      %v3025 = vadd.f32 0.0, %v3024
      %3026 = vmatmul.bf16.gmra.mxu0 %v2942
      %v3027 = vpop.f32.mrf.mxu0
      %v3028 = vadd.f32 0.0, %v3027
      %v3029 = vpop.f32.mrf.mxu0
      %v3030 = vadd.f32 0.0, %v3029
      %3031 = vmatmul.bf16.gmra.mxu0 %v2945
      %v3032 = vpop.f32.mrf.mxu0
      %v3033 = vadd.f32 0.0, %v3032
      %v3034 = vpop.f32.mrf.mxu0
      %v3035 = vadd.f32 0.0, %v3034
      %3036 = vmatmul.bf16.gmra.mxu0 %v2948
      %v3037 = vpop.f32.mrf.mxu0
      %v3038 = vadd.f32 0.0, %v3037
      %v3039 = vpop.f32.mrf.mxu0
      %v3040 = vadd.f32 0.0, %v3039
      %3041 = vmatmul.bf16.gmra.mxu0 %v2951
      %v3042 = vpop.f32.mrf.mxu0
      %v3043 = vadd.f32 0.0, %v3042
      %v3044 = vpop.f32.mrf.mxu0
      %v3045 = vadd.f32 0.0, %v3044
      %3046 = vmatmul.bf16.gmra.mxu0 %v2954
      %v3047 = vpop.f32.mrf.mxu0
      %v3048 = vadd.f32 0.0, %v3047
      %v3049 = vpop.f32.mrf.mxu0
      %v3050 = vadd.f32 0.0, %v3049
      %3051 = vmatmul.bf16.gmra.mxu0 %v2957
      %v3052 = vpop.f32.mrf.mxu0
      %v3053 = vadd.f32 0.0, %v3052
      %v3054 = vpop.f32.mrf.mxu0
      %v3055 = vadd.f32 0.0, %v3054
      %3056 = vmatmul.bf16.gmra.mxu0 %v2960
      %v3057 = vpop.f32.mrf.mxu0
      %v3058 = vadd.f32 0.0, %v3057
      %v3059 = vpop.f32.mrf.mxu0
      %v3060 = vadd.f32 0.0, %v3059
      %3061 = vmatmul.bf16.gmra.mxu0 %v2963
      %v3062 = vpop.f32.mrf.mxu0
      %v3063 = vadd.f32 0.0, %v3062
      %v3064 = vpop.f32.mrf.mxu0
      %v3065 = vadd.f32 0.0, %v3064
      %3066 = vdwg.mxu0
      %v3067 = vadd.f32 %v2831, %v2978
      %v3068 = vadd.f32 %v2832, %v2980
      %v3069 = vadd.f32 %v2833, %v2983
      %v3070 = vadd.f32 %v2834, %v2985
      %v3071 = vadd.f32 %v2835, %v2988
      %v3072 = vadd.f32 %v2836, %v2990
      %v3073 = vadd.f32 %v2837, %v2993
      %v3074 = vadd.f32 %v2838, %v2995
      %v3075 = vadd.f32 %v2839, %v2998
      %v3076 = vadd.f32 %v2840, %v3000
      %v3077 = vadd.f32 %v2841, %v3003
      %v3078 = vadd.f32 %v2842, %v3005
      %v3079 = vadd.f32 %v2843, %v3008
      %v3080 = vadd.f32 %v2844, %v3010
      %v3081 = vadd.f32 %v2845, %v3013
      %v3082 = vadd.f32 %v2846, %v3015
      %v3083 = vadd.f32 %v2847, %v3018
      %v3084 = vadd.f32 %v2848, %v3020
      %v3085 = vadd.f32 %v2849, %v3023
      %v3086 = vadd.f32 %v2850, %v3025
      %v3087 = vadd.f32 %v2851, %v3028
      %v3088 = vadd.f32 %v2852, %v3030
      %v3089 = vadd.f32 %v2853, %v3033
      %v3090 = vadd.f32 %v2854, %v3035
      %v3091 = vadd.f32 %v2855, %v3038
      %v3092 = vadd.f32 %v2856, %v3040
      %v3093 = vadd.f32 %v2857, %v3043
      %v3094 = vadd.f32 %v2858, %v3045
      %v3095 = vadd.f32 %v2859, %v3048
      %v3096 = vadd.f32 %v2860, %v3050
      %v3097 = vadd.f32 %v2861, %v3053
      %v3098 = vadd.f32 %v2862, %v3055
      %v3099 = vadd.f32 %v2863, %v3058
      %v3100 = vadd.f32 %v2864, %v3060
      %v3101 = vadd.f32 %v2865, %v3063
      %v3102 = vadd.f32 %v2866, %v3065
      %v3103 = vld [vmem:[%s2] sm:$0x1]
      %v3105 = vperm.slane %v3103, 0
      %v3107 = vadd.f32 %v3067, %v3105
      %v3108 = vadd.f32 %v3068, %v3105
      %v3109 = vadd.f32 %v3069, %v3105
      %v3110 = vadd.f32 %v3070, %v3105
      %v3111 = vadd.f32 %v3071, %v3105
      %v3112 = vadd.f32 %v3072, %v3105
      %v3113 = vadd.f32 %v3073, %v3105
      %v3114 = vadd.f32 %v3074, %v3105
      %v3115 = vadd.f32 %v3075, %v3105
      %v3116 = vadd.f32 %v3076, %v3105
      %v3117 = vadd.f32 %v3077, %v3105
      %v3118 = vadd.f32 %v3078, %v3105
      %v3119 = vadd.f32 %v3079, %v3105
      %v3120 = vadd.f32 %v3080, %v3105
      %v3121 = vadd.f32 %v3081, %v3105
      %v3122 = vadd.f32 %v3082, %v3105
      %v3123 = vadd.f32 %v3083, %v3105
      %v3124 = vadd.f32 %v3084, %v3105
      %v3125 = vadd.f32 %v3085, %v3105
      %v3126 = vadd.f32 %v3086, %v3105
      %v3127 = vadd.f32 %v3087, %v3105
      %v3128 = vadd.f32 %v3088, %v3105
      %v3129 = vadd.f32 %v3089, %v3105
      %v3130 = vadd.f32 %v3090, %v3105
      %v3131 = vadd.f32 %v3091, %v3105
      %v3132 = vadd.f32 %v3092, %v3105
      %v3133 = vadd.f32 %v3093, %v3105
      %v3134 = vadd.f32 %v3094, %v3105
      %v3135 = vadd.f32 %v3095, %v3105
      %v3136 = vadd.f32 %v3096, %v3105
      %v3137 = vadd.f32 %v3097, %v3105
      %v3138 = vadd.f32 %v3098, %v3105
      %v3139 = vadd.f32 %v3099, %v3105
      %v3140 = vadd.f32 %v3100, %v3105
      %v3141 = vadd.f32 %v3101, %v3105
      %v3142 = vadd.f32 %v3102, %v3105
      %v3143 = vmax.f32 %v3107, 0.0
      %v3144 = vmax.f32 %v3108, 0.0
      %v3145 = vmax.f32 %v3109, 0.0
      %v3146 = vmax.f32 %v3110, 0.0
      %v3147 = vmax.f32 %v3111, 0.0
      %v3148 = vmax.f32 %v3112, 0.0
      %v3149 = vmax.f32 %v3113, 0.0
      %v3150 = vmax.f32 %v3114, 0.0
      %v3151 = vmax.f32 %v3115, 0.0
      %v3152 = vmax.f32 %v3116, 0.0
      %v3153 = vmax.f32 %v3117, 0.0
      %v3154 = vmax.f32 %v3118, 0.0
      %v3155 = vmax.f32 %v3119, 0.0
      %v3156 = vmax.f32 %v3120, 0.0
      %v3157 = vmax.f32 %v3121, 0.0
      %v3158 = vmax.f32 %v3122, 0.0
      %v3159 = vmax.f32 %v3123, 0.0
      %v3160 = vmax.f32 %v3124, 0.0
      %v3161 = vmax.f32 %v3125, 0.0
      %v3162 = vmax.f32 %v3126, 0.0
      %v3163 = vmax.f32 %v3127, 0.0
      %v3164 = vmax.f32 %v3128, 0.0
      %v3165 = vmax.f32 %v3129, 0.0
      %v3166 = vmax.f32 %v3130, 0.0
      %v3167 = vmax.f32 %v3131, 0.0
      %v3168 = vmax.f32 %v3132, 0.0
      %v3169 = vmax.f32 %v3133, 0.0
      %v3170 = vmax.f32 %v3134, 0.0
      %v3171 = vmax.f32 %v3135, 0.0
      %v3172 = vmax.f32 %v3136, 0.0
      %v3173 = vmax.f32 %v3137, 0.0
      %v3174 = vmax.f32 %v3138, 0.0
      %v3175 = vmax.f32 %v3139, 0.0
      %v3176 = vmax.f32 %v3140, 0.0
      %v3177 = vmax.f32 %v3141, 0.0
      %v3178 = vmax.f32 %v3142, 0.0
      %v3179 = vld [vmem:[%s3] sm:$0x7]
      %v3181 = vperm.slane %v3179, 0
      %v3182 = vperm.slane %v3179, 1
      %v3183 = vperm.slane %v3179, 2
      %vm3186 = vcmask 261120
      %v3187 = vsel %vm3186, %v3183, 0
      %3189 = vmatpush.msra.mxu0 %v3158
      %3190 = vmatpush.msra.mxu0 %v3157
      %3191 = vmatpush.msra.mxu0 %v3156
      %3192 = vmatpush.msra.mxu0 %v3155
      %3193 = vmatpush.msra.mxu0 %v3154
      %3194 = vmatpush.msra.mxu0 %v3153
      %3195 = vmatpush.msra.mxu0 %v3152
      %3196 = vmatpush.msra.mxu0 %v3151
      %3197 = vmatpush.msra.mxu0 %v3150
      %3198 = vmatpush.msra.mxu0 %v3149
      %3199 = vmatpush.msra.mxu0 %v3148
      %3200 = vmatpush.msra.mxu0 %v3147
      %3201 = vmatpush.msra.mxu0 %v3146
      %3202 = vmatpush.msra.mxu0 %v3145
      %3203 = vmatpush.msra.mxu0 %v3144
      %3204 = vmatpush.msra.mxu0 %v3143
      %3205 = vmatmul.f32.gmra.mxu0 %v3181
      %v3206 = vpop.f32.mrf.mxu0
      %v3207 = vadd.f32 0.0, %v3206
      %3208 = vdwg.mxu0
      %3209 = vmatpush.msra.mxu0 %v3174
      %3210 = vmatpush.msra.mxu0 %v3173
      %3211 = vmatpush.msra.mxu0 %v3172
      %3212 = vmatpush.msra.mxu0 %v3171
      %3213 = vmatpush.msra.mxu0 %v3170
      %3214 = vmatpush.msra.mxu0 %v3169
      %3215 = vmatpush.msra.mxu0 %v3168
      %3216 = vmatpush.msra.mxu0 %v3167
      %3217 = vmatpush.msra.mxu0 %v3166
      %3218 = vmatpush.msra.mxu0 %v3165
      %3219 = vmatpush.msra.mxu0 %v3164
      %3220 = vmatpush.msra.mxu0 %v3163
      %3221 = vmatpush.msra.mxu0 %v3162
      %3222 = vmatpush.msra.mxu0 %v3161
      %3223 = vmatpush.msra.mxu0 %v3160
      %3224 = vmatpush.msra.mxu0 %v3159
      %3225 = vmatmul.f32.gmra.mxu0 %v3182
      %v3226 = vpop.f32.mrf.mxu0
      %v3227 = vadd.f32 %v3207, %v3226
      %3228 = vdwg.mxu0
      %3229 = vmatpush.msra.mxu0 0.0
      %3230 = vmatpush.msra.mxu0 0.0
      %3231 = vmatpush.msra.mxu0 0.0
      %3232 = vmatpush.msra.mxu0 0.0
      %3233 = vmatpush.msra.mxu0 0.0
      %3234 = vmatpush.msra.mxu0 0.0
      %3235 = vmatpush.msra.mxu0 0.0
      %3236 = vmatpush.msra.mxu0 0.0
      %3237 = vmatpush.msra.mxu0 0.0
      %3238 = vmatpush.msra.mxu0 0.0
      %3239 = vmatpush.msra.mxu0 0.0
      %3240 = vmatpush.msra.mxu0 0.0
      %3241 = vmatpush.msra.mxu0 %v3178
      %3242 = vmatpush.msra.mxu0 %v3177
      %3243 = vmatpush.msra.mxu0 %v3176
      %3244 = vmatpush.msra.mxu0 %v3175
      %3245 = vmatmul.f32.gmra.mxu0 %v3187
      %v3246 = vpop.f32.mrf.mxu0
      %v3247 = vadd.f32 %v3227, %v3246
      %3248 = vdwg.mxu0
      %v3249 = vpack.c.bf16 %v3247, %v3247
      %v3250 = vld [vmem:[%s4] sm:$0xf]
      %v3251 = vld [vmem:[%s5] sm:$0x1]
      %vm3252 = vcmask 64512
      %v3254 = vsel %vm3252, %v3249, 0
      %vm3256 = vcmask 1043456
      %v3258 = vsel %vm3256, %v3250, 0
      %3260 = vmatpush.bf16.msra.mxu0 0
      %3261 = vmatpush.bf16.msra.mxu0 0
      %3262 = vmatpush.bf16.msra.mxu0 0
      %3263 = vmatpush.bf16.msra.mxu0 0
      %3264 = vmatpush.bf16.msra.mxu0 0
      %3265 = vmatpush.bf16.msra.mxu0 0
      %3266 = vmatpush.bf16.msra.mxu0 0
      %3267 = vmatpush.bf16.msra.mxu0 %v3258
      %3268 = vmatmul.bf16.gmra.mxu0 %v3254
      %v3269 = vpop.f32.mrf.mxu0
      %v3270 = vadd.f32 %v3251, %v3269
      %v3271 = vpop.f32.mrf.mxu0
      %3272 = vdwg.mxu0
      %v3273 = vmax.f32 %v3270, 0.0
      %v3274 = vpack.c.bf16 %v3273, %v3273
      %v3275 = vld [vmem:[%s6] sm:$0xf]
      %v3276 = vld [vmem:[%s6 + $0x4] sm:$0xf]
      %v3277 = vld [vmem:[%s6 + $0x8] sm:$0xf]
      %v3278 = vld [vmem:[%s6 + $0xc] sm:$0xf]
      %v3279 = vld [vmem:[%s6 + $0x10] sm:$0xf]
      %v3280 = vld [vmem:[%s6 + $0x14] sm:$0xf]
      %v3281 = vld [vmem:[%s6 + $0x18] sm:$0xf]
      %v3282 = vld [vmem:[%s6 + $0x1c] sm:$0xf]
      %v3283 = vld [vmem:[%s7] sm:$0x1]
      %v3292 = vunpack.c.l.b16 %v3275
      %v3293 = vunpack.c.l.b16 %v3276
      %v3294 = vunpack.c.l.b16 %v3277
      %v3295 = vunpack.c.l.b16 %v3278
      %v3296 = vunpack.c.l.b16 %v3279
      %v3297 = vunpack.c.l.b16 %v3280
      %v3298 = vunpack.c.l.b16 %v3281
      %v3299 = vunpack.c.l.b16 %v3282
      %v3300 = vpack.c.b16 %v3293, %v3292
      %v3301 = vpack.c.b16 %v3295, %v3294
      %v3302 = vpack.c.b16 %v3297, %v3296
      %v3303 = vpack.c.b16 %v3299, %v3298
      %vm3308 = vcmask 523264
      %v3310 = vsel %vm3308, %v3274, 0
      %3312 = vmatpush.bf16.msra.mxu0 0
      %3313 = vmatpush.bf16.msra.mxu0 0
      %3314 = vmatpush.bf16.msra.mxu0 0
      %3315 = vmatpush.bf16.msra.mxu0 0
      %3316 = vmatpush.bf16.msra.mxu0 %v3303
      %3317 = vmatpush.bf16.msra.mxu0 %v3302
      %3318 = vmatpush.bf16.msra.mxu0 %v3301
      %3319 = vmatpush.bf16.msra.mxu0 %v3300
      %3320 = vmatmul.bf16.gmra.mxu0 %v3310
      %v3321 = vpop.f32.mrf.mxu0
      %v3322 = vadd.f32 %v3283, %v3321
      %v3323 = vpop.f32.mrf.mxu0
      %3324 = vdwg.mxu0
      %v3325 = vmax.f32 %v3322, 0.0
      %v3326 = vpack.c.bf16 %v3325, %v3325
      %v3327 = vld [vmem:[%s8] sm:$0xf]
      %v3328 = vld [vmem:[%s8 + $0x4] sm:$0xf]
      %v3329 = vld [vmem:[%s8 + $0x8] sm:$0xf]
      %v3330 = vld [vmem:[%s8 + $0xc] sm:$0xf]
      %v3331 = vld [vmem:[%s9] sm:$0x1]
      %v3336 = vunpack.c.l.b16 %v3327
      %v3337 = vunpack.c.l.b16 %v3328
      %v3338 = vunpack.c.l.b16 %v3329
      %v3339 = vunpack.c.l.b16 %v3330
      %v3340 = vpack.c.b16 %v3337, %v3336
      %v3341 = vpack.c.b16 %v3339, %v3338
      %v3345 = vsel %vm3186, %v3326, 0
      %3347 = vmatpush.bf16.msra.mxu0 0
      %3348 = vmatpush.bf16.msra.mxu0 0
      %3349 = vmatpush.bf16.msra.mxu0 0
      %3350 = vmatpush.bf16.msra.mxu0 0
      %3351 = vmatpush.bf16.msra.mxu0 0
      %3352 = vmatpush.bf16.msra.mxu0 0
      %3353 = vmatpush.bf16.msra.mxu0 %v3341
      %3354 = vmatpush.bf16.msra.mxu0 %v3340
      %3355 = vmatmul.bf16.gmra.mxu0 %v3345
      %v3356 = vpop.f32.mrf.mxu0
      %v3357 = vadd.f32 %v3331, %v3356
      %v3358 = vpop.f32.mrf.mxu0
      %3359 = vdwg.mxu0
      %v3360 = vmax.f32 %v3357, 0.0
      %3361 = vst [vmem:[%s355] sm:$0x1] %v3360
      %p3362 = scmp.lt.s32.totalorder %s21, 5
      %s3363 = scalar_select %p3362, %s21, 5
      %s3364 = scalar_lea.vmem %s10, %s3363
      // Predicated region
      $region61: #{mrinet_forward.1} parent=59 // pred_check
        %p3365 = pneg %p254
      $region62: #{mrinet_forward.1} parent=59 // pred_check_branch
        %3367 = sbr.rel (%p3365) target = $region64
      $region63: #{mrinet_forward.1} parent=59 // pred_region
        _
      $region64: #{mrinet_forward.1} parent=59 // pred_fallthru
        _
    $region60: #{mrinet_forward.1} parent=5 // pred_fallthru
      _
    %p3368 = scmp.le.s32.totalorder 2, %s16
    // Predicated region
    $region65: #{mrinet_forward.1} parent=5 // pred_check
      %p3369 = pneg %p3368
    $region66: #{mrinet_forward.1} parent=5 // pred_check_branch
      %3371 = sbr.rel (%p3369) target = $region68
    $region67: #{mrinet_forward.1} parent=5 // pred_region
      %s3372 = ssub.s32 %s16, 2
      // Predicated region
      $region69: #{mrinet_forward.1} parent=67 // pred_check
        %p3373 = pneg %p260
      $region70: #{mrinet_forward.1} parent=67 // pred_check_branch
        %3375 = sbr.rel (%p3373) target = $region72
      $region71: #{mrinet_forward.1} parent=67 // pred_region
        %p3376 = scmp.lt.s32.totalorder %s22, 5
        %s3377 = scalar_select %p3376, %s22, 5
        %s3378 = scalar_lea.vmem %s10, %s3377
      $region72: #{mrinet_forward.1} parent=67 // pred_fallthru
        _
    $region68: #{mrinet_forward.1} parent=5 // pred_fallthru
      _
  $region6: #{mrinet_forward.1} parent=0 // loop_footer
    %s20 = sadd.s32 1, %s16
  $region7: #{mrinet_forward.1} parent=0 // loop_footer_branch
    %15 = sbr.rel target = $region3
  $region8: #{mrinet_forward.1} parent=0 // loop_exit
    _

</llo_original>
